<compile_context>
chip_gen: v7x
topology: tpu7x:2x2x1
jax: 0.10.0
libtpu: 0.0.40
codegen_flags: <defaults>
</compile_context>

<pallas_src>
import functools

import jax
import jax.numpy as jnp
from jax.experimental import pallas as pl
from jax.experimental.pallas import tpu as pltpu

# OGB-style atom feature cardinalities (ATOM_FEATURES_DIM in the reference code).
ATOM_FEATURES_DIM = [119, 4, 12, 12, 10, 6, 6, 2, 2]

BLOCK_ROWS = 128  # vocab rows per lane block of the packed table


def _atom_encoder_kernel(x_ref, tab_ref, o_ref, *, feat_blocks, sub_n, block_rows):
    # x_ref:  [TN, F]            int32, indices already shifted to block-local offsets
    # tab_ref:[NB*block_rows, D] bf16, block-packed embedding tables (VMEM resident)
    # o_ref:  [TN, D]            f32 (or bf16 if out_dtype=bf16)
    tile_n = o_ref.shape[0]
    num_sub = tile_n // sub_n

    # Hoisted: ONE lane-iota shared by every feature block and sub-block.
    col = jax.lax.broadcasted_iota(jnp.int32, (sub_n, block_rows), 1)

    def sub_block(s, carry):
        start = pl.multiple_of(s * sub_n, sub_n)
        idx = x_ref[pl.ds(start, sub_n), :]                      # [SUB, F] i32
        acc = None
        for b, feats in enumerate(feat_blocks):
            # Per-block multi-hot: each feature only compares against the 128
            # columns it lives in.  Column ranges within a block are disjoint,
            # so sum over features == OR (one bool->bf16 cast per block).
            hit = col == idx[:, feats[0]][:, None]
            for f in feats[1:]:
                hit = jnp.logical_or(hit, col == idx[:, f][:, None])
            mh = hit.astype(jnp.bfloat16)                        # exact 0/1
            part = jnp.dot(mh,
                           tab_ref[b * block_rows:(b + 1) * block_rows, :],
                           preferred_element_type=jnp.float32)   # K=128 MXU dot
            acc = part if acc is None else acc + part
        o_ref[pl.ds(start, sub_n), :] = acc.astype(o_ref.dtype)
        return carry

    # fori_loop (not a Python for) bounds vreg live ranges; unroll=2 keeps some
    # ILP for the LLO scheduler without blowing the 64-vreg file.
    jax.lax.fori_loop(0, num_sub, sub_block, 0, unroll=2)


def atom_encoder_pallas(x_local, table_bf16, feat_blocks, *, tile_n=512,
                        sub_n=128, block_rows=BLOCK_ROWS,
                        out_dtype=jnp.float32):
    """x_local: [N, F] int32 (block-local shifted), table_bf16: [NB*128, D] bf16."""
    n, f = x_local.shape
    v_pad, d = table_bf16.shape
    assert n % tile_n == 0, "pad N to a multiple of tile_n"
    assert tile_n % sub_n == 0 and sub_n % 8 == 0
    assert v_pad == len(feat_blocks) * block_rows
    assert d % 128 == 0, "dim_emb must be a multiple of 128 (lane-dense output)"

    kernel = functools.partial(_atom_encoder_kernel, feat_blocks=feat_blocks,
                               sub_n=sub_n, block_rows=block_rows)
    return pl.pallas_call(
        kernel,
        out_shape=jax.ShapeDtypeStruct((n, d), out_dtype),
        grid_spec=pltpu.PrefetchScalarGridSpec(
            num_scalar_prefetch=0,
            grid=(n // tile_n,),
            in_specs=[
                pl.BlockSpec((tile_n, f), lambda i: (i, 0)),
                # Constant block index: table DMA'd once, VMEM resident after.
                pl.BlockSpec((v_pad, d), lambda i: (0, 0)),
            ],
            out_specs=pl.BlockSpec((tile_n, d), lambda i: (i, 0)),
        ),
        compiler_params=pltpu.CompilerParams(
            dimension_semantics=("parallel",)),
    )(x_local, table_bf16)


def build_atom_encoder_params(dim_emb, key):
    """Xavier-uniform Embedding(dim+1, dim_emb) per feature, packed into
    128-row blocks so no feature straddles a lane-block boundary.  The bf16
    cast is done here ONCE (hoisted out of the forward path)."""
    placements = []            # (block, local_offset, weight) per feature
    cur_block, cur_used = 0, 0
    for dim in ATOM_FEATURES_DIM:
        num_emb = dim + 1
        assert num_emb <= BLOCK_ROWS
        if cur_used + num_emb > BLOCK_ROWS:      # never straddle a 128 boundary
            cur_block += 1
            cur_used = 0
        key, sub = jax.random.split(key)
        bound = (6.0 / (num_emb + dim_emb)) ** 0.5   # xavier_uniform_
        w = jax.random.uniform(sub, (num_emb, dim_emb), jnp.float32,
                               minval=-bound, maxval=bound)
        placements.append((cur_block, cur_used, w))
        cur_used += num_emb
    num_blocks = cur_block + 1

    table = jnp.zeros((num_blocks * BLOCK_ROWS, dim_emb), jnp.float32)
    for b, lo, w in placements:
        r0 = b * BLOCK_ROWS + lo
        table = table.at[r0:r0 + w.shape[0]].set(w)

    local_offsets = jnp.asarray([lo for _, lo, _ in placements], jnp.int32)
    global_offsets = jnp.asarray([b * BLOCK_ROWS + lo for b, lo, _ in placements],
                                 jnp.int32)
    feat_blocks = tuple(
        tuple(f for f, (b, _, _) in enumerate(placements) if b == bb)
        for bb in range(num_blocks))
    return table.astype(jnp.bfloat16), local_offsets, global_offsets, feat_blocks


def atom_encoder_forward(x_int, table_bf16, local_offsets, feat_blocks, *,
                         tile_n=None, sub_n=128, out_dtype=jnp.float32):
    """Full forward: shift indices to block-local offsets, run the kernel."""
    n = x_int.shape[0]
    if tile_n is None:
        # Keep >= 4 grid steps (>= 2 per v7x TensorCore) for DMA pipelining
        # when N allows, but never drop below one 128-atom MXU sub-block.
        tile_n = 512
        while tile_n > sub_n and pl.cdiv(n, tile_n) < 4:
            tile_n //= 2
    x_local = x_int.astype(jnp.int32) + local_offsets[None, :]
    n_pad = ((n + tile_n - 1) // tile_n) * tile_n
    if n_pad != n:
        # Padded rows compute valid index-0 embedding sums; sliced off below.
        x_local = jnp.pad(x_local, ((0, n_pad - n), (0, 0)))
    out = atom_encoder_pallas(x_local, table_bf16, feat_blocks,
                              tile_n=tile_n, sub_n=sub_n, out_dtype=out_dtype)
    return out[:n]


def atom_encoder_reference(x_int, table_bf16, global_offsets):
    """Pure-JAX reference: sum_f table[global_offset_f + x[:, f]] (same bf16 weights)."""
    table = table_bf16.astype(jnp.float32)
    rows = x_int.astype(jnp.int32) + global_offsets[None, :]
    gathered = jnp.take(table, rows.reshape(-1), axis=0)
    return gathered.reshape(x_int.shape[0], x_int.shape[1], -1).sum(axis=1)


if __name__ == "__main__":
    dim_emb = 128
    n_atoms = 1024          # auto-tiled to tile_n=256 -> 4 grid steps
    n_feat = len(ATOM_FEATURES_DIM)

    key = jax.random.PRNGKey(0)
    k_tab, k_x = jax.random.split(key)
    table_bf16, local_offsets, global_offsets, feat_blocks = \
        build_atom_encoder_params(dim_emb, k_tab)

    # Deterministic integer atom features, each within its feature's vocab (dim+1).
    cols = []
    for dim in ATOM_FEATURES_DIM:
        k_x, sub = jax.random.split(k_x)
        cols.append(jax.random.randint(sub, (n_atoms, 1), 0, dim + 1, jnp.int32))
    x = jnp.concatenate(cols, axis=1)                   # [N, F] int32

    out = atom_encoder_forward(x, table_bf16, local_offsets, feat_blocks)
    out = jax.block_until_ready(out)

    ref = atom_encoder_reference(x, table_bf16, global_offsets)
    assert out.shape == (n_atoms, dim_emb)
    assert jnp.allclose(out, ref, atol=1e-4, rtol=1e-4), "mismatch vs reference"

    print("KERNEL_OK")
</pallas_src>

<mosaic_0001>
module attributes {stable_mosaic.version = 11 : i64} {
  func.func @_atom_encoder_kernel(%arg0: i32, %arg1: memref<256x9xi32, #tpu.memory_space<vmem>>, %arg2: memref<256x128xbf16, #tpu.memory_space<vmem>>, %arg3: memref<256x128xf32, #tpu.memory_space<vmem>>) attributes {dimension_semantics = [#tpu.dimension_semantics<parallel>], iteration_bounds = array<i64: 4>, scalar_prefetch = 0 : i64, scratch_operands = 0 : i64, tpu.core_type = #tpu.core_type<tc>, window_params = [{transform_indices = @transform_0, window_bounds = array<i64: 256, 9>}, {pipeline_mode = #tpu.pipeline_mode<synchronous>, transform_indices = @transform_1, window_bounds = array<i64: 256, 128>}, {transform_indices = @transform_2, window_bounds = array<i64: 256, 128>}]} {
    %0 = tpu.iota {dimensions = array<i32: 1>} : vector<128x128xi32>
    %c0_i32 = arith.constant 0 : i32
    %c128_i32 = arith.constant 128 : i32
    %1 = arith.muli %c0_i32, %c128_i32 : i32
    %2 = tpu.assume_multiple %1, 128 : i32
    %3 = arith.index_cast %2 : i32 to index
    %c0 = arith.constant 0 : index
    %4 = vector.load %arg1[%3, %c0] : memref<256x9xi32, #tpu.memory_space<vmem>>, vector<128x9xi32>
    %5 = vector.extract_strided_slice %4 {offsets = [0, 0], sizes = [128, 1], strides = [1, 1]} : vector<128x9xi32> to vector<128x1xi32>
    %6 = vector.shape_cast %5 : vector<128x1xi32> to vector<128xi32>
    %7 = vector.shape_cast %6 : vector<128xi32> to vector<128x1xi32>
    %8 = vector.broadcast %7 : vector<128x1xi32> to vector<128x128xi32>
    %9 = arith.cmpi eq, %0, %8 : vector<128x128xi32>
    %10 = vector.extract_strided_slice %4 {offsets = [0, 1], sizes = [128, 1], strides = [1, 1]} : vector<128x9xi32> to vector<128x1xi32>
    %11 = vector.shape_cast %10 : vector<128x1xi32> to vector<128xi32>
    %12 = vector.shape_cast %11 : vector<128xi32> to vector<128x1xi32>
    %13 = vector.broadcast %12 : vector<128x1xi32> to vector<128x128xi32>
    %14 = arith.cmpi eq, %0, %13 : vector<128x128xi32>
    %15 = arith.ori %9, %14 : vector<128x128xi1>
    %16 = arith.extui %15 : vector<128x128xi1> to vector<128x128xi32>
    %17 = arith.sitofp %16 : vector<128x128xi32> to vector<128x128xf32>
    %18 = arith.truncf %17 : vector<128x128xf32> to vector<128x128xbf16>
    %c0_0 = arith.constant 0 : index
    %c0_1 = arith.constant 0 : index
    %19 = vector.load %arg2[%c0_0, %c0_1] : memref<256x128xbf16, #tpu.memory_space<vmem>>, vector<128x128xbf16>
    %cst = arith.constant dense<0.000000e+00> : vector<128x128xf32>
    %20 = tpu.matmul %18, %19, %cst {dimension_numbers = #tpu.dot_dimension_numbers<[1], [0], [0], [1], [0, 0, 1, 1], [], []>} : vector<128x128xbf16>, vector<128x128xbf16>, vector<128x128xf32> -> vector<128x128xf32>
    %21 = vector.extract_strided_slice %4 {offsets = [0, 2], sizes = [128, 1], strides = [1, 1]} : vector<128x9xi32> to vector<128x1xi32>
    %22 = vector.shape_cast %21 : vector<128x1xi32> to vector<128xi32>
    %23 = vector.shape_cast %22 : vector<128xi32> to vector<128x1xi32>
    %24 = vector.broadcast %23 : vector<128x1xi32> to vector<128x128xi32>
    %25 = arith.cmpi eq, %0, %24 : vector<128x128xi32>
    %26 = vector.extract_strided_slice %4 {offsets = [0, 3], sizes = [128, 1], strides = [1, 1]} : vector<128x9xi32> to vector<128x1xi32>
    %27 = vector.shape_cast %26 : vector<128x1xi32> to vector<128xi32>
    %28 = vector.shape_cast %27 : vector<128xi32> to vector<128x1xi32>
    %29 = vector.broadcast %28 : vector<128x1xi32> to vector<128x128xi32>
    %30 = arith.cmpi eq, %0, %29 : vector<128x128xi32>
    %31 = arith.ori %25, %30 : vector<128x128xi1>
    %32 = vector.extract_strided_slice %4 {offsets = [0, 4], sizes = [128, 1], strides = [1, 1]} : vector<128x9xi32> to vector<128x1xi32>
    %33 = vector.shape_cast %32 : vector<128x1xi32> to vector<128xi32>
    %34 = vector.shape_cast %33 : vector<128xi32> to vector<128x1xi32>
    %35 = vector.broadcast %34 : vector<128x1xi32> to vector<128x128xi32>
    %36 = arith.cmpi eq, %0, %35 : vector<128x128xi32>
    %37 = arith.ori %31, %36 : vector<128x128xi1>
    %38 = vector.extract_strided_slice %4 {offsets = [0, 5], sizes = [128, 1], strides = [1, 1]} : vector<128x9xi32> to vector<128x1xi32>
    %39 = vector.shape_cast %38 : vector<128x1xi32> to vector<128xi32>
    %40 = vector.shape_cast %39 : vector<128xi32> to vector<128x1xi32>
    %41 = vector.broadcast %40 : vector<128x1xi32> to vector<128x128xi32>
    %42 = arith.cmpi eq, %0, %41 : vector<128x128xi32>
    %43 = arith.ori %37, %42 : vector<128x128xi1>
    %44 = vector.extract_strided_slice %4 {offsets = [0, 6], sizes = [128, 1], strides = [1, 1]} : vector<128x9xi32> to vector<128x1xi32>
    %45 = vector.shape_cast %44 : vector<128x1xi32> to vector<128xi32>
    %46 = vector.shape_cast %45 : vector<128xi32> to vector<128x1xi32>
    %47 = vector.broadcast %46 : vector<128x1xi32> to vector<128x128xi32>
    %48 = arith.cmpi eq, %0, %47 : vector<128x128xi32>
    %49 = arith.ori %43, %48 : vector<128x128xi1>
    %50 = vector.extract_strided_slice %4 {offsets = [0, 7], sizes = [128, 1], strides = [1, 1]} : vector<128x9xi32> to vector<128x1xi32>
    %51 = vector.shape_cast %50 : vector<128x1xi32> to vector<128xi32>
    %52 = vector.shape_cast %51 : vector<128xi32> to vector<128x1xi32>
    %53 = vector.broadcast %52 : vector<128x1xi32> to vector<128x128xi32>
    %54 = arith.cmpi eq, %0, %53 : vector<128x128xi32>
    %55 = arith.ori %49, %54 : vector<128x128xi1>
    %56 = vector.extract_strided_slice %4 {offsets = [0, 8], sizes = [128, 1], strides = [1, 1]} : vector<128x9xi32> to vector<128x1xi32>
    %57 = vector.shape_cast %56 : vector<128x1xi32> to vector<128xi32>
    %58 = vector.shape_cast %57 : vector<128xi32> to vector<128x1xi32>
    %59 = vector.broadcast %58 : vector<128x1xi32> to vector<128x128xi32>
    %60 = arith.cmpi eq, %0, %59 : vector<128x128xi32>
    %61 = arith.ori %55, %60 : vector<128x128xi1>
    %62 = arith.extui %61 : vector<128x128xi1> to vector<128x128xi32>
    %63 = arith.sitofp %62 : vector<128x128xi32> to vector<128x128xf32>
    %64 = arith.truncf %63 : vector<128x128xf32> to vector<128x128xbf16>
    %c128 = arith.constant 128 : index
    %c0_2 = arith.constant 0 : index
    %65 = vector.load %arg2[%c128, %c0_2] : memref<256x128xbf16, #tpu.memory_space<vmem>>, vector<128x128xbf16>
    %cst_3 = arith.constant dense<0.000000e+00> : vector<128x128xf32>
    %66 = tpu.matmul %64, %65, %cst_3 {dimension_numbers = #tpu.dot_dimension_numbers<[1], [0], [0], [1], [0, 0, 1, 1], [], []>} : vector<128x128xbf16>, vector<128x128xbf16>, vector<128x128xf32> -> vector<128x128xf32>
    %67 = arith.addf %20, %66 : vector<128x128xf32>
    %68 = arith.index_cast %2 : i32 to index
    %c0_4 = arith.constant 0 : index
    %69 = vector.load %arg3[%68, %c0_4] : memref<256x128xf32, #tpu.memory_space<vmem>>, vector<128x128xf32>
    tpu.vector_store %arg3[%68, %c0_4], %67 {strides = array<i32>} : memref<256x128xf32, #tpu.memory_space<vmem>>, vector<128x128xf32>,
    %c1_i32 = arith.constant 1 : i32
    %c128_i32_5 = arith.constant 128 : i32
    %70 = arith.muli %c1_i32, %c128_i32_5 : i32
    %71 = tpu.assume_multiple %70, 128 : i32
    %72 = arith.index_cast %71 : i32 to index
    %c0_6 = arith.constant 0 : index
    %73 = vector.load %arg1[%72, %c0_6] : memref<256x9xi32, #tpu.memory_space<vmem>>, vector<128x9xi32>
    %74 = vector.extract_strided_slice %73 {offsets = [0, 0], sizes = [128, 1], strides = [1, 1]} : vector<128x9xi32> to vector<128x1xi32>
    %75 = vector.shape_cast %74 : vector<128x1xi32> to vector<128xi32>
    %76 = vector.shape_cast %75 : vector<128xi32> to vector<128x1xi32>
    %77 = vector.broadcast %76 : vector<128x1xi32> to vector<128x128xi32>
    %78 = arith.cmpi eq, %0, %77 : vector<128x128xi32>
    %79 = vector.extract_strided_slice %73 {offsets = [0, 1], sizes = [128, 1], strides = [1, 1]} : vector<128x9xi32> to vector<128x1xi32>
    %80 = vector.shape_cast %79 : vector<128x1xi32> to vector<128xi32>
    %81 = vector.shape_cast %80 : vector<128xi32> to vector<128x1xi32>
    %82 = vector.broadcast %81 : vector<128x1xi32> to vector<128x128xi32>
    %83 = arith.cmpi eq, %0, %82 : vector<128x128xi32>
    %84 = arith.ori %78, %83 : vector<128x128xi1>
    %85 = arith.extui %84 : vector<128x128xi1> to vector<128x128xi32>
    %86 = arith.sitofp %85 : vector<128x128xi32> to vector<128x128xf32>
    %87 = arith.truncf %86 : vector<128x128xf32> to vector<128x128xbf16>
    %c0_7 = arith.constant 0 : index
    %c0_8 = arith.constant 0 : index
    %88 = vector.load %arg2[%c0_7, %c0_8] : memref<256x128xbf16, #tpu.memory_space<vmem>>, vector<128x128xbf16>
    %cst_9 = arith.constant dense<0.000000e+00> : vector<128x128xf32>
    %89 = tpu.matmul %87, %88, %cst_9 {dimension_numbers = #tpu.dot_dimension_numbers<[1], [0], [0], [1], [0, 0, 1, 1], [], []>} : vector<128x128xbf16>, vector<128x128xbf16>, vector<128x128xf32> -> vector<128x128xf32>
    %90 = vector.extract_strided_slice %73 {offsets = [0, 2], sizes = [128, 1], strides = [1, 1]} : vector<128x9xi32> to vector<128x1xi32>
    %91 = vector.shape_cast %90 : vector<128x1xi32> to vector<128xi32>
    %92 = vector.shape_cast %91 : vector<128xi32> to vector<128x1xi32>
    %93 = vector.broadcast %92 : vector<128x1xi32> to vector<128x128xi32>
    %94 = arith.cmpi eq, %0, %93 : vector<128x128xi32>
    %95 = vector.extract_strided_slice %73 {offsets = [0, 3], sizes = [128, 1], strides = [1, 1]} : vector<128x9xi32> to vector<128x1xi32>
    %96 = vector.shape_cast %95 : vector<128x1xi32> to vector<128xi32>
    %97 = vector.shape_cast %96 : vector<128xi32> to vector<128x1xi32>
    %98 = vector.broadcast %97 : vector<128x1xi32> to vector<128x128xi32>
    %99 = arith.cmpi eq, %0, %98 : vector<128x128xi32>
    %100 = arith.ori %94, %99 : vector<128x128xi1>
    %101 = vector.extract_strided_slice %73 {offsets = [0, 4], sizes = [128, 1], strides = [1, 1]} : vector<128x9xi32> to vector<128x1xi32>
    %102 = vector.shape_cast %101 : vector<128x1xi32> to vector<128xi32>
    %103 = vector.shape_cast %102 : vector<128xi32> to vector<128x1xi32>
    %104 = vector.broadcast %103 : vector<128x1xi32> to vector<128x128xi32>
    %105 = arith.cmpi eq, %0, %104 : vector<128x128xi32>
    %106 = arith.ori %100, %105 : vector<128x128xi1>
    %107 = vector.extract_strided_slice %73 {offsets = [0, 5], sizes = [128, 1], strides = [1, 1]} : vector<128x9xi32> to vector<128x1xi32>
    %108 = vector.shape_cast %107 : vector<128x1xi32> to vector<128xi32>
    %109 = vector.shape_cast %108 : vector<128xi32> to vector<128x1xi32>
    %110 = vector.broadcast %109 : vector<128x1xi32> to vector<128x128xi32>
    %111 = arith.cmpi eq, %0, %110 : vector<128x128xi32>
    %112 = arith.ori %106, %111 : vector<128x128xi1>
    %113 = vector.extract_strided_slice %73 {offsets = [0, 6], sizes = [128, 1], strides = [1, 1]} : vector<128x9xi32> to vector<128x1xi32>
    %114 = vector.shape_cast %113 : vector<128x1xi32> to vector<128xi32>
    %115 = vector.shape_cast %114 : vector<128xi32> to vector<128x1xi32>
    %116 = vector.broadcast %115 : vector<128x1xi32> to vector<128x128xi32>
    %117 = arith.cmpi eq, %0, %116 : vector<128x128xi32>
    %118 = arith.ori %112, %117 : vector<128x128xi1>
    %119 = vector.extract_strided_slice %73 {offsets = [0, 7], sizes = [128, 1], strides = [1, 1]} : vector<128x9xi32> to vector<128x1xi32>
    %120 = vector.shape_cast %119 : vector<128x1xi32> to vector<128xi32>
    %121 = vector.shape_cast %120 : vector<128xi32> to vector<128x1xi32>
    %122 = vector.broadcast %121 : vector<128x1xi32> to vector<128x128xi32>
    %123 = arith.cmpi eq, %0, %122 : vector<128x128xi32>
    %124 = arith.ori %118, %123 : vector<128x128xi1>
    %125 = vector.extract_strided_slice %73 {offsets = [0, 8], sizes = [128, 1], strides = [1, 1]} : vector<128x9xi32> to vector<128x1xi32>
    %126 = vector.shape_cast %125 : vector<128x1xi32> to vector<128xi32>
    %127 = vector.shape_cast %126 : vector<128xi32> to vector<128x1xi32>
    %128 = vector.broadcast %127 : vector<128x1xi32> to vector<128x128xi32>
    %129 = arith.cmpi eq, %0, %128 : vector<128x128xi32>
    %130 = arith.ori %124, %129 : vector<128x128xi1>
    %131 = arith.extui %130 : vector<128x128xi1> to vector<128x128xi32>
    %132 = arith.sitofp %131 : vector<128x128xi32> to vector<128x128xf32>
    %133 = arith.truncf %132 : vector<128x128xf32> to vector<128x128xbf16>
    %c128_10 = arith.constant 128 : index
    %c0_11 = arith.constant 0 : index
    %134 = vector.load %arg2[%c128_10, %c0_11] : memref<256x128xbf16, #tpu.memory_space<vmem>>, vector<128x128xbf16>
    %cst_12 = arith.constant dense<0.000000e+00> : vector<128x128xf32>
    %135 = tpu.matmul %133, %134, %cst_12 {dimension_numbers = #tpu.dot_dimension_numbers<[1], [0], [0], [1], [0, 0, 1, 1], [], []>} : vector<128x128xbf16>, vector<128x128xbf16>, vector<128x128xf32> -> vector<128x128xf32>
    %136 = arith.addf %89, %135 : vector<128x128xf32>
    %137 = arith.index_cast %71 : i32 to index
    %c0_13 = arith.constant 0 : index
    %138 = vector.load %arg3[%137, %c0_13] : memref<256x128xf32, #tpu.memory_space<vmem>>, vector<128x128xf32>
    tpu.vector_store %arg3[%137, %c0_13], %136 {strides = array<i32>} : memref<256x128xf32, #tpu.memory_space<vmem>>, vector<128x128xf32>,
    %c2_i32 = arith.constant 2 : i32
    return
  }
  func.func @transform_0(%arg0: i32) -> (i32, i32) {
    %c0_i32 = arith.constant 0 : i32
    %c0_i32_0 = arith.constant 0 : i32
    return %arg0, %c0_i32 : i32, i32
  }
  func.func @transform_1(%arg0: i32) -> (i32, i32) {
    %c0_i32 = arith.constant 0 : i32
    %c0_i32_0 = arith.constant 0 : i32
    %c0_i32_1 = arith.constant 0 : i32
    return %c0_i32, %c0_i32_0 : i32, i32
  }
  func.func @transform_2(%arg0: i32) -> (i32, i32) {
    %c0_i32 = arith.constant 0 : i32
    %c0_i32_0 = arith.constant 0 : i32
    return %arg0, %c0_i32 : i32, i32
  }
}

</mosaic_0001>

<llo_original>
// kernel: tpu_custom_call.1
$region0: #{tpu_custom_call.1}
  #allocation0 [shape = 'u32[]', space=smem, size = 0x4, offset = 0x4, fixed_abs, tag = 'smem constant byte address 0x4 - core index']
  #allocation1 [shape = 'u32[144,128]{1,0:T(1,128)}', space=vmem, size = 0x12000, scoped, tag = 'internal scratch']
  %s0 = inlined_call_operand.vmem [shape: s32[1024,9], index: 0, kind: input, shape index: {}]
  %s1 = inlined_call_operand.vmem [shape: bf16[256,128], index: 1, kind: input, shape index: {}]
  %s2 = inlined_call_operand.hbm [shape: f32[1024,128], index: 2, kind: output, shape index: {}]
  %s3 = sld [smem:[#allocation0]]
  $region41: #{tpu_custom_call.1} parent=0
    _
  %s5 = ssub.s32 1, %s3
  %s6 = scalar_select 0, %s5, %s3
  $region1: #{tpu_custom_call.1} parent=0
    #allocation2 [shape = 'u8[262144]{0}', space=vmem, size = 0x40000, scoped, tag = 'output window, operand 0']
    #allocation3 [shape = 's32[2]{0}', space=sflag, size = 0x8, scoped, tag = 'scoped memory for tpu_custom_call.1']
    %7 = vsyncpa [#allocation3], 0
    %s8 = scalar_lea.sflag [#allocation3], 1
    %9 = vsyncpa %s8, 0
    loop: start=0, step=1, limit=6
    $region2: #{tpu_custom_call.1} parent=1 // loop_pre_header
      _
    $region3: #{tpu_custom_call.1} parent=1 // loop_header
      %s11 = sphi 0, %s15
      %p12 = scmp.ge.s32.totalorder %s11, 6
      %s21 = sphi 0, %s23
      %s24 = sphi 0, %s21
      %s25 = sphi 0, %s24
      %s41 = sphi 0, %s25
      %s45 = sphi 0, %s45
      %s47 = sphi 0, %s45
      %s48 = sphi 0, %s47
      %s62 = sphi 0, %s48
      %s68 = sphi 0, %s70
      %s71 = sphi 0, %s68
      %s72 = sphi 0, %s71
      %s88 = sphi 0, %s72
    $region4: #{tpu_custom_call.1} parent=1 // loop_header_branch
      %14 = sbr.rel (%p12) target = $region8
    $region5: #{tpu_custom_call.1} parent=1 // loop_body
      %s16 = ssub.s32 %s11, 1
      %s17 = ssub.s32 %s11, 2
      %s18 = sadd.s32 %s11, 1
      %s19 = ssub.s32 %s11, %s18
      %p20 = scmp.eq.s32.totalorder %s19, 0
      %s22 = sadd.s32 %s21, 1
      %s23 = scalar_select %p20, %s21, %s22
      %p26 = pneg %p20
      %p27 = scmp.eq.s32.totalorder %s11, 3
      %p28 = por %p26, %p27
      %p29 = scmp.ne.s32.totalorder %s21, %s24
      %p30 = scmp.eq.s32.totalorder %s11, 0
      %p31 = por %p29, %p30
      %p32 = scmp.ne.s32.totalorder %s21, %s24
      %p33 = scmp.eq.s32.totalorder %s16, 3
      %p34 = por %p32, %p33
      %p35 = scmp.ne.s32.totalorder %s24, %s25
      %p36 = scmp.eq.s32.totalorder %s16, 0
      %p37 = por %p35, %p36
      %p38 = scmp.ne.s32.totalorder %s24, %s25
      %p39 = scmp.eq.s32.totalorder %s17, 3
      %p40 = por %p38, %p39
      %p42 = scmp.ne.s32.totalorder %s25, %s41
      %p43 = scmp.eq.s32.totalorder %s17, 0
      %p44 = por %p42, %p43
      %s46 = sadd.s32 %s45, 1
      %p49 = scmp.eq.s32.totalorder %s11, 3
      %p50 = scmp.ne.s32.totalorder %s45, %s47
      %p51 = scmp.eq.s32.totalorder %s11, 0
      %p52 = por %p50, %p51
      %p53 = scmp.ne.s32.totalorder %s45, %s47
      %p54 = scmp.eq.s32.totalorder %s16, 3
      %p55 = por %p53, %p54
      %p56 = scmp.ne.s32.totalorder %s47, %s48
      %p57 = scmp.eq.s32.totalorder %s16, 0
      %p58 = por %p56, %p57
      %p59 = scmp.ne.s32.totalorder %s47, %s48
      %p60 = scmp.eq.s32.totalorder %s17, 3
      %p61 = por %p59, %p60
      %p63 = scmp.ne.s32.totalorder %s48, %s62
      %p64 = scmp.eq.s32.totalorder %s17, 0
      %p65 = por %p63, %p64
      %s66 = ssub.s32 %s11, %s18
      %p67 = scmp.eq.s32.totalorder %s66, 0
      %s69 = sadd.s32 %s68, 1
      %s70 = scalar_select %p67, %s68, %s69
      %p73 = pneg %p67
      %p74 = scmp.eq.s32.totalorder %s11, 3
      %p75 = por %p73, %p74
      %p76 = scmp.ne.s32.totalorder %s68, %s71
      %p77 = scmp.eq.s32.totalorder %s11, 0
      %p78 = por %p76, %p77
      %p79 = scmp.ne.s32.totalorder %s68, %s71
      %p80 = scmp.eq.s32.totalorder %s16, 3
      %p81 = por %p79, %p80
      %p82 = scmp.ne.s32.totalorder %s71, %s72
      %p83 = scmp.eq.s32.totalorder %s16, 0
      %p84 = por %p82, %p83
      %p85 = scmp.ne.s32.totalorder %s71, %s72
      %p86 = scmp.eq.s32.totalorder %s17, 3
      %p87 = por %p85, %p86
      %p89 = scmp.ne.s32.totalorder %s72, %s88
      %p90 = scmp.eq.s32.totalorder %s17, 0
      %p91 = por %p89, %p90
      %p92 = scmp.le.s32.totalorder 1, %s11
      %p93 = scmp.lt.s32.totalorder %s11, 5
      %p94 = pnand %p92, %p93
      %p95 = pneg %p94
      // Predicated region
      $region9: #{tpu_custom_call.1} parent=5 // pred_check
        _
      $region10: #{tpu_custom_call.1} parent=5 // pred_check_branch
        %97 = sbr.rel (%p94) target = $region12
      $region11: #{tpu_custom_call.1} parent=5 // pred_region
        %s98 = ssub.s32 %s11, 1
        // Predicated region
        $region13: #{tpu_custom_call.1} parent=11 // pred_check
          %p99 = pneg %p58
        $region14: #{tpu_custom_call.1} parent=11 // pred_check_branch
          %101 = sbr.rel (%p99) target = $region16
        $region15: #{tpu_custom_call.1} parent=11 // pred_region
          _
        $region16: #{tpu_custom_call.1} parent=11 // pred_fallthru
          _
      $region12: #{tpu_custom_call.1} parent=5 // pred_fallthru
        _
      %p102 = scmp.lt.s32.totalorder %s11, 4
      // Predicated region
      $region17: #{tpu_custom_call.1} parent=5 // pred_check
        %p103 = pneg %p102
      $region18: #{tpu_custom_call.1} parent=5 // pred_check_branch
        %105 = sbr.rel (%p103) target = $region20
      $region19: #{tpu_custom_call.1} parent=5 // pred_region
        // Predicated region
        $region21: #{tpu_custom_call.1} parent=19 // pred_check
          %p106 = pneg %p31
        $region22: #{tpu_custom_call.1} parent=19 // pred_check_branch
          %108 = sbr.rel (%p106) target = $region24
        $region23: #{tpu_custom_call.1} parent=19 // pred_region
          %s109 = smul.u32 32, %s11
          %p110 = scmp.lt.s32.totalorder %s109, 127
          %s111 = scalar_select %p110, %s109, 127
          %s112 = smul.addr %s111, 8
          %s113 = scalar_lea.vmem %s0, %s112
          %s114 = smul.u32 32, %s11
        $region24: #{tpu_custom_call.1} parent=19 // pred_fallthru
          _
      $region20: #{tpu_custom_call.1} parent=5 // pred_fallthru
        _
      %p115 = scmp.le.s32.totalorder 1, %s11
      %p116 = scmp.lt.s32.totalorder %s11, 5
      %p117 = pnand %p115, %p116
      %p118 = pneg %p117
      // Predicated region
      $region25: #{tpu_custom_call.1} parent=5 // pred_check
        _
      $region26: #{tpu_custom_call.1} parent=5 // pred_check_branch
        %120 = sbr.rel (%p117) target = $region28
      $region27: #{tpu_custom_call.1} parent=5 // pred_region
        %s121 = ssub.s32 %s11, 1
        %s122 = smul.u32 32, %s16
        %p123 = scmp.lt.s32.totalorder %s122, 127
        %s124 = scalar_select %p123, %s122, 127
        %s125 = smul.addr %s124, 8
        %s126 = scalar_lea.vmem %s0, %s125
        %p127 = pneg %p37
        %p128 = pneg %p34
        %p129 = pneg %p58
        %p130 = pneg %p55
        %p131 = pneg %p84
        %p132 = pneg %p81
        %s133 = sand.u32 %s71, 1
        %s134 = scalar_lea.sflag [#allocation3], %s133
        %s135 = sand.u32 %s71, 1
        %s136 = smul.addr %s135, 256
        %s137 = scalar_lea.vmem [#allocation2], %s136
        %s138 = smul.u32 32, %s16
        %p139 = scmp.lt.s32.totalorder %s138, 127
        %s140 = scalar_select %p139, %s138, 127
        %s141 = smul.addr %s140, 8
        %s142 = scalar_lea.vmem %s0, %s141
        %s143 = smul.u32 32, %s16
        %s144 = smul.u32 32, %s16
        %v146 = vlaneseq
        %v147 = vand.u32 %v146, 127
        %v148 = vld [vmem:[%s142] sm:$0xff]
        %v149 = vld [vmem:[%s142 + $0x8] sm:$0xff]
        %v150 = vld [vmem:[%s142 + $0x10] sm:$0xff]
        %v151 = vld [vmem:[%s142 + $0x18] sm:$0xff]
        %v152 = vld [vmem:[%s142 + $0x20] sm:$0xff]
        %v153 = vld [vmem:[%s142 + $0x28] sm:$0xff]
        %v154 = vld [vmem:[%s142 + $0x30] sm:$0xff]
        %v155 = vld [vmem:[%s142 + $0x38] sm:$0xff]
        %v156 = vld [vmem:[%s142 + $0x40] sm:$0xff]
        %v157 = vld [vmem:[%s142 + $0x48] sm:$0xff]
        %v158 = vld [vmem:[%s142 + $0x50] sm:$0xff]
        %v159 = vld [vmem:[%s142 + $0x58] sm:$0xff]
        %v160 = vld [vmem:[%s142 + $0x60] sm:$0xff]
        %v161 = vld [vmem:[%s142 + $0x68] sm:$0xff]
        %v162 = vld [vmem:[%s142 + $0x70] sm:$0xff]
        %v163 = vld [vmem:[%s142 + $0x78] sm:$0xff]
        %164 = vset.pattern.permute.xlu0 0
        %165 = vperm.xlu0 %164, %v148
        %v166 = vpop.permute.xlu0 %165
        %167 = vset.pattern.permute.xlu0 0
        %168 = vperm.xlu0 %167, %v149
        %v169 = vpop.permute.xlu0 %168
        %170 = vset.pattern.permute.xlu0 0
        %171 = vperm.xlu0 %170, %v150
        %v172 = vpop.permute.xlu0 %171
        %173 = vset.pattern.permute.xlu0 0
        %174 = vperm.xlu0 %173, %v151
        %v175 = vpop.permute.xlu0 %174
        %176 = vset.pattern.permute.xlu0 0
        %177 = vperm.xlu0 %176, %v152
        %v178 = vpop.permute.xlu0 %177
        %179 = vset.pattern.permute.xlu0 0
        %180 = vperm.xlu0 %179, %v153
        %v181 = vpop.permute.xlu0 %180
        %182 = vset.pattern.permute.xlu0 0
        %183 = vperm.xlu0 %182, %v154
        %v184 = vpop.permute.xlu0 %183
        %185 = vset.pattern.permute.xlu0 0
        %186 = vperm.xlu0 %185, %v155
        %v187 = vpop.permute.xlu0 %186
        %188 = vset.pattern.permute.xlu0 0
        %189 = vperm.xlu0 %188, %v156
        %v190 = vpop.permute.xlu0 %189
        %191 = vset.pattern.permute.xlu0 0
        %192 = vperm.xlu0 %191, %v157
        %v193 = vpop.permute.xlu0 %192
        %194 = vset.pattern.permute.xlu0 0
        %195 = vperm.xlu0 %194, %v158
        %v196 = vpop.permute.xlu0 %195
        %197 = vset.pattern.permute.xlu0 0
        %198 = vperm.xlu0 %197, %v159
        %v199 = vpop.permute.xlu0 %198
        %200 = vset.pattern.permute.xlu0 0
        %201 = vperm.xlu0 %200, %v160
        %v202 = vpop.permute.xlu0 %201
        %203 = vset.pattern.permute.xlu0 0
        %204 = vperm.xlu0 %203, %v161
        %v205 = vpop.permute.xlu0 %204
        %206 = vset.pattern.permute.xlu0 0
        %207 = vperm.xlu0 %206, %v162
        %v208 = vpop.permute.xlu0 %207
        %209 = vset.pattern.permute.xlu0 0
        %210 = vperm.xlu0 %209, %v163
        %v211 = vpop.permute.xlu0 %210
        %vm212 = vcmp.eq.s32.totalorder %v147, %v166
        %vm213 = vcmp.eq.s32.totalorder %v147, %v169
        %vm214 = vcmp.eq.s32.totalorder %v147, %v172
        %vm215 = vcmp.eq.s32.totalorder %v147, %v175
        %vm216 = vcmp.eq.s32.totalorder %v147, %v178
        %vm217 = vcmp.eq.s32.totalorder %v147, %v181
        %vm218 = vcmp.eq.s32.totalorder %v147, %v184
        %vm219 = vcmp.eq.s32.totalorder %v147, %v187
        %vm220 = vcmp.eq.s32.totalorder %v147, %v190
        %vm221 = vcmp.eq.s32.totalorder %v147, %v193
        %vm222 = vcmp.eq.s32.totalorder %v147, %v196
        %vm223 = vcmp.eq.s32.totalorder %v147, %v199
        %vm224 = vcmp.eq.s32.totalorder %v147, %v202
        %vm225 = vcmp.eq.s32.totalorder %v147, %v205
        %vm226 = vcmp.eq.s32.totalorder %v147, %v208
        %vm227 = vcmp.eq.s32.totalorder %v147, %v211
        %228 = vset.pattern.permute.xlu0 1
        %229 = vperm.xlu0 %228, %v148
        %v230 = vpop.permute.xlu0 %229
        %231 = vset.pattern.permute.xlu0 1
        %232 = vperm.xlu0 %231, %v149
        %v233 = vpop.permute.xlu0 %232
        %234 = vset.pattern.permute.xlu0 1
        %235 = vperm.xlu0 %234, %v150
        %v236 = vpop.permute.xlu0 %235
        %237 = vset.pattern.permute.xlu0 1
        %238 = vperm.xlu0 %237, %v151
        %v239 = vpop.permute.xlu0 %238
        %240 = vset.pattern.permute.xlu0 1
        %241 = vperm.xlu0 %240, %v152
        %v242 = vpop.permute.xlu0 %241
        %243 = vset.pattern.permute.xlu0 1
        %244 = vperm.xlu0 %243, %v153
        %v245 = vpop.permute.xlu0 %244
        %246 = vset.pattern.permute.xlu0 1
        %247 = vperm.xlu0 %246, %v154
        %v248 = vpop.permute.xlu0 %247
        %249 = vset.pattern.permute.xlu0 1
        %250 = vperm.xlu0 %249, %v155
        %v251 = vpop.permute.xlu0 %250
        %252 = vset.pattern.permute.xlu0 1
        %253 = vperm.xlu0 %252, %v156
        %v254 = vpop.permute.xlu0 %253
        %255 = vset.pattern.permute.xlu0 1
        %256 = vperm.xlu0 %255, %v157
        %v257 = vpop.permute.xlu0 %256
        %258 = vset.pattern.permute.xlu0 1
        %259 = vperm.xlu0 %258, %v158
        %v260 = vpop.permute.xlu0 %259
        %261 = vset.pattern.permute.xlu0 1
        %262 = vperm.xlu0 %261, %v159
        %v263 = vpop.permute.xlu0 %262
        %264 = vset.pattern.permute.xlu0 1
        %265 = vperm.xlu0 %264, %v160
        %v266 = vpop.permute.xlu0 %265
        %267 = vset.pattern.permute.xlu0 1
        %268 = vperm.xlu0 %267, %v161
        %v269 = vpop.permute.xlu0 %268
        %270 = vset.pattern.permute.xlu0 1
        %271 = vperm.xlu0 %270, %v162
        %v272 = vpop.permute.xlu0 %271
        %273 = vset.pattern.permute.xlu0 1
        %274 = vperm.xlu0 %273, %v163
        %v275 = vpop.permute.xlu0 %274
        %vm276 = vcmp.eq.s32.totalorder %v147, %v230
        %vm277 = vcmp.eq.s32.totalorder %v147, %v233
        %vm278 = vcmp.eq.s32.totalorder %v147, %v236
        %vm279 = vcmp.eq.s32.totalorder %v147, %v239
        %vm280 = vcmp.eq.s32.totalorder %v147, %v242
        %vm281 = vcmp.eq.s32.totalorder %v147, %v245
        %vm282 = vcmp.eq.s32.totalorder %v147, %v248
        %vm283 = vcmp.eq.s32.totalorder %v147, %v251
        %vm284 = vcmp.eq.s32.totalorder %v147, %v254
        %vm285 = vcmp.eq.s32.totalorder %v147, %v257
        %vm286 = vcmp.eq.s32.totalorder %v147, %v260
        %vm287 = vcmp.eq.s32.totalorder %v147, %v263
        %vm288 = vcmp.eq.s32.totalorder %v147, %v266
        %vm289 = vcmp.eq.s32.totalorder %v147, %v269
        %vm290 = vcmp.eq.s32.totalorder %v147, %v272
        %vm291 = vcmp.eq.s32.totalorder %v147, %v275
        %vm292 = vmor %vm212, %vm276
        %vm293 = vmor %vm213, %vm277
        %vm294 = vmor %vm214, %vm278
        %vm295 = vmor %vm215, %vm279
        %vm296 = vmor %vm216, %vm280
        %vm297 = vmor %vm217, %vm281
        %vm298 = vmor %vm218, %vm282
        %vm299 = vmor %vm219, %vm283
        %vm300 = vmor %vm220, %vm284
        %vm301 = vmor %vm221, %vm285
        %vm302 = vmor %vm222, %vm286
        %vm303 = vmor %vm223, %vm287
        %vm304 = vmor %vm224, %vm288
        %vm305 = vmor %vm225, %vm289
        %vm306 = vmor %vm226, %vm290
        %vm307 = vmor %vm227, %vm291
        %v308 = vsel %vm292, 1, 0
        %v309 = vsel %vm293, 1, 0
        %v310 = vsel %vm294, 1, 0
        %v311 = vsel %vm295, 1, 0
        %v312 = vsel %vm296, 1, 0
        %v313 = vsel %vm297, 1, 0
        %v314 = vsel %vm298, 1, 0
        %v315 = vsel %vm299, 1, 0
        %v316 = vsel %vm300, 1, 0
        %v317 = vsel %vm301, 1, 0
        %v318 = vsel %vm302, 1, 0
        %v319 = vsel %vm303, 1, 0
        %v320 = vsel %vm304, 1, 0
        %v321 = vsel %vm305, 1, 0
        %v322 = vsel %vm306, 1, 0
        %v323 = vsel %vm307, 1, 0
        %v324 = vcvt.s32.f32 %v308
        %v325 = vcvt.s32.f32 %v309
        %v326 = vcvt.s32.f32 %v310
        %v327 = vcvt.s32.f32 %v311
        %v328 = vcvt.s32.f32 %v312
        %v329 = vcvt.s32.f32 %v313
        %v330 = vcvt.s32.f32 %v314
        %v331 = vcvt.s32.f32 %v315
        %v332 = vcvt.s32.f32 %v316
        %v333 = vcvt.s32.f32 %v317
        %v334 = vcvt.s32.f32 %v318
        %v335 = vcvt.s32.f32 %v319
        %v336 = vcvt.s32.f32 %v320
        %v337 = vcvt.s32.f32 %v321
        %v338 = vcvt.s32.f32 %v322
        %v339 = vcvt.s32.f32 %v323
        %v340 = vpack.c.bf16 %v325, %v324
        %v341 = vpack.c.bf16 %v327, %v326
        %v342 = vpack.c.bf16 %v329, %v328
        %v343 = vpack.c.bf16 %v331, %v330
        %v344 = vpack.c.bf16 %v333, %v332
        %v345 = vpack.c.bf16 %v335, %v334
        %v346 = vpack.c.bf16 %v337, %v336
        %v347 = vpack.c.bf16 %v339, %v338
        %v348 = vld [vmem:[%s1] sm:$0xf]
        %v349 = vld [vmem:[%s1 + $0x4] sm:$0xf]
        %v350 = vld [vmem:[%s1 + $0x8] sm:$0xf]
        %v351 = vld [vmem:[%s1 + $0xc] sm:$0xf]
        %v352 = vld [vmem:[%s1 + $0x10] sm:$0xf]
        %v353 = vld [vmem:[%s1 + $0x14] sm:$0xf]
        %v354 = vld [vmem:[%s1 + $0x18] sm:$0xf]
        %v355 = vld [vmem:[%s1 + $0x1c] sm:$0xf]
        %v356 = vld [vmem:[%s1 + $0x20] sm:$0xf]
        %v357 = vld [vmem:[%s1 + $0x24] sm:$0xf]
        %v358 = vld [vmem:[%s1 + $0x28] sm:$0xf]
        %v359 = vld [vmem:[%s1 + $0x2c] sm:$0xf]
        %v360 = vld [vmem:[%s1 + $0x30] sm:$0xf]
        %v361 = vld [vmem:[%s1 + $0x34] sm:$0xf]
        %v362 = vld [vmem:[%s1 + $0x38] sm:$0xf]
        %v363 = vld [vmem:[%s1 + $0x3c] sm:$0xf]
        %364 = vset.pattern.permute.xlu0 2
        %365 = vperm.xlu0 %364, %v148
        %v366 = vpop.permute.xlu0 %365
        %367 = vset.pattern.permute.xlu0 2
        %368 = vperm.xlu0 %367, %v149
        %v369 = vpop.permute.xlu0 %368
        %370 = vset.pattern.permute.xlu0 2
        %371 = vperm.xlu0 %370, %v150
        %v372 = vpop.permute.xlu0 %371
        %373 = vset.pattern.permute.xlu0 2
        %374 = vperm.xlu0 %373, %v151
        %v375 = vpop.permute.xlu0 %374
        %376 = vset.pattern.permute.xlu0 2
        %377 = vperm.xlu0 %376, %v152
        %v378 = vpop.permute.xlu0 %377
        %379 = vset.pattern.permute.xlu0 2
        %380 = vperm.xlu0 %379, %v153
        %v381 = vpop.permute.xlu0 %380
        %382 = vset.pattern.permute.xlu0 2
        %383 = vperm.xlu0 %382, %v154
        %v384 = vpop.permute.xlu0 %383
        %385 = vset.pattern.permute.xlu0 2
        %386 = vperm.xlu0 %385, %v155
        %v387 = vpop.permute.xlu0 %386
        %388 = vset.pattern.permute.xlu0 2
        %389 = vperm.xlu0 %388, %v156
        %v390 = vpop.permute.xlu0 %389
        %391 = vset.pattern.permute.xlu0 2
        %392 = vperm.xlu0 %391, %v157
        %v393 = vpop.permute.xlu0 %392
        %394 = vset.pattern.permute.xlu0 2
        %395 = vperm.xlu0 %394, %v158
        %v396 = vpop.permute.xlu0 %395
        %397 = vset.pattern.permute.xlu0 2
        %398 = vperm.xlu0 %397, %v159
        %v399 = vpop.permute.xlu0 %398
        %400 = vset.pattern.permute.xlu0 2
        %401 = vperm.xlu0 %400, %v160
        %v402 = vpop.permute.xlu0 %401
        %403 = vset.pattern.permute.xlu0 2
        %404 = vperm.xlu0 %403, %v161
        %v405 = vpop.permute.xlu0 %404
        %406 = vset.pattern.permute.xlu0 2
        %407 = vperm.xlu0 %406, %v162
        %v408 = vpop.permute.xlu0 %407
        %409 = vset.pattern.permute.xlu0 2
        %410 = vperm.xlu0 %409, %v163
        %v411 = vpop.permute.xlu0 %410
        %vm412 = vcmp.eq.s32.totalorder %v147, %v366
        %vm413 = vcmp.eq.s32.totalorder %v147, %v369
        %vm414 = vcmp.eq.s32.totalorder %v147, %v372
        %vm415 = vcmp.eq.s32.totalorder %v147, %v375
        %vm416 = vcmp.eq.s32.totalorder %v147, %v378
        %vm417 = vcmp.eq.s32.totalorder %v147, %v381
        %vm418 = vcmp.eq.s32.totalorder %v147, %v384
        %vm419 = vcmp.eq.s32.totalorder %v147, %v387
        %vm420 = vcmp.eq.s32.totalorder %v147, %v390
        %vm421 = vcmp.eq.s32.totalorder %v147, %v393
        %vm422 = vcmp.eq.s32.totalorder %v147, %v396
        %vm423 = vcmp.eq.s32.totalorder %v147, %v399
        %vm424 = vcmp.eq.s32.totalorder %v147, %v402
        %vm425 = vcmp.eq.s32.totalorder %v147, %v405
        %vm426 = vcmp.eq.s32.totalorder %v147, %v408
        %vm427 = vcmp.eq.s32.totalorder %v147, %v411
        %428 = vset.pattern.permute.xlu0 3
        %429 = vperm.xlu0 %428, %v148
        %v430 = vpop.permute.xlu0 %429
        %431 = vset.pattern.permute.xlu0 3
        %432 = vperm.xlu0 %431, %v149
        %v433 = vpop.permute.xlu0 %432
        %434 = vset.pattern.permute.xlu0 3
        %435 = vperm.xlu0 %434, %v150
        %v436 = vpop.permute.xlu0 %435
        %437 = vset.pattern.permute.xlu0 3
        %438 = vperm.xlu0 %437, %v151
        %v439 = vpop.permute.xlu0 %438
        %440 = vset.pattern.permute.xlu0 3
        %441 = vperm.xlu0 %440, %v152
        %v442 = vpop.permute.xlu0 %441
        %443 = vset.pattern.permute.xlu0 3
        %444 = vperm.xlu0 %443, %v153
        %v445 = vpop.permute.xlu0 %444
        %446 = vset.pattern.permute.xlu0 3
        %447 = vperm.xlu0 %446, %v154
        %v448 = vpop.permute.xlu0 %447
        %449 = vset.pattern.permute.xlu0 3
        %450 = vperm.xlu0 %449, %v155
        %v451 = vpop.permute.xlu0 %450
        %452 = vset.pattern.permute.xlu0 3
        %453 = vperm.xlu0 %452, %v156
        %v454 = vpop.permute.xlu0 %453
        %455 = vset.pattern.permute.xlu0 3
        %456 = vperm.xlu0 %455, %v157
        %v457 = vpop.permute.xlu0 %456
        %458 = vset.pattern.permute.xlu0 3
        %459 = vperm.xlu0 %458, %v158
        %v460 = vpop.permute.xlu0 %459
        %461 = vset.pattern.permute.xlu0 3
        %462 = vperm.xlu0 %461, %v159
        %v463 = vpop.permute.xlu0 %462
        %464 = vset.pattern.permute.xlu0 3
        %465 = vperm.xlu0 %464, %v160
        %v466 = vpop.permute.xlu0 %465
        %467 = vset.pattern.permute.xlu0 3
        %468 = vperm.xlu0 %467, %v161
        %v469 = vpop.permute.xlu0 %468
        %470 = vset.pattern.permute.xlu0 3
        %471 = vperm.xlu0 %470, %v162
        %v472 = vpop.permute.xlu0 %471
        %473 = vset.pattern.permute.xlu0 3
        %474 = vperm.xlu0 %473, %v163
        %v475 = vpop.permute.xlu0 %474
        %vm476 = vcmp.eq.s32.totalorder %v147, %v430
        %vm477 = vcmp.eq.s32.totalorder %v147, %v433
        %vm478 = vcmp.eq.s32.totalorder %v147, %v436
        %vm479 = vcmp.eq.s32.totalorder %v147, %v439
        %vm480 = vcmp.eq.s32.totalorder %v147, %v442
        %vm481 = vcmp.eq.s32.totalorder %v147, %v445
        %vm482 = vcmp.eq.s32.totalorder %v147, %v448
        %vm483 = vcmp.eq.s32.totalorder %v147, %v451
        %vm484 = vcmp.eq.s32.totalorder %v147, %v454
        %vm485 = vcmp.eq.s32.totalorder %v147, %v457
        %vm486 = vcmp.eq.s32.totalorder %v147, %v460
        %vm487 = vcmp.eq.s32.totalorder %v147, %v463
        %vm488 = vcmp.eq.s32.totalorder %v147, %v466
        %vm489 = vcmp.eq.s32.totalorder %v147, %v469
        %vm490 = vcmp.eq.s32.totalorder %v147, %v472
        %vm491 = vcmp.eq.s32.totalorder %v147, %v475
        %vm492 = vmor %vm412, %vm476
        %vm493 = vmor %vm413, %vm477
        %vm494 = vmor %vm414, %vm478
        %vm495 = vmor %vm415, %vm479
        %vm496 = vmor %vm416, %vm480
        %vm497 = vmor %vm417, %vm481
        %vm498 = vmor %vm418, %vm482
        %vm499 = vmor %vm419, %vm483
        %vm500 = vmor %vm420, %vm484
        %vm501 = vmor %vm421, %vm485
        %vm502 = vmor %vm422, %vm486
        %vm503 = vmor %vm423, %vm487
        %vm504 = vmor %vm424, %vm488
        %vm505 = vmor %vm425, %vm489
        %vm506 = vmor %vm426, %vm490
        %vm507 = vmor %vm427, %vm491
        %508 = vset.pattern.permute.xlu0 4
        %509 = vperm.xlu0 %508, %v148
        %v510 = vpop.permute.xlu0 %509
        %511 = vset.pattern.permute.xlu0 4
        %512 = vperm.xlu0 %511, %v149
        %v513 = vpop.permute.xlu0 %512
        %514 = vset.pattern.permute.xlu0 4
        %515 = vperm.xlu0 %514, %v150
        %v516 = vpop.permute.xlu0 %515
        %517 = vset.pattern.permute.xlu0 4
        %518 = vperm.xlu0 %517, %v151
        %v519 = vpop.permute.xlu0 %518
        %520 = vset.pattern.permute.xlu0 4
        %521 = vperm.xlu0 %520, %v152
        %v522 = vpop.permute.xlu0 %521
        %523 = vset.pattern.permute.xlu0 4
        %524 = vperm.xlu0 %523, %v153
        %v525 = vpop.permute.xlu0 %524
        %526 = vset.pattern.permute.xlu0 4
        %527 = vperm.xlu0 %526, %v154
        %v528 = vpop.permute.xlu0 %527
        %529 = vset.pattern.permute.xlu0 4
        %530 = vperm.xlu0 %529, %v155
        %v531 = vpop.permute.xlu0 %530
        %532 = vset.pattern.permute.xlu0 4
        %533 = vperm.xlu0 %532, %v156
        %v534 = vpop.permute.xlu0 %533
        %535 = vset.pattern.permute.xlu0 4
        %536 = vperm.xlu0 %535, %v157
        %v537 = vpop.permute.xlu0 %536
        %538 = vset.pattern.permute.xlu0 4
        %539 = vperm.xlu0 %538, %v158
        %v540 = vpop.permute.xlu0 %539
        %541 = vset.pattern.permute.xlu0 4
        %542 = vperm.xlu0 %541, %v159
        %v543 = vpop.permute.xlu0 %542
        %544 = vset.pattern.permute.xlu0 4
        %545 = vperm.xlu0 %544, %v160
        %v546 = vpop.permute.xlu0 %545
        %547 = vset.pattern.permute.xlu0 4
        %548 = vperm.xlu0 %547, %v161
        %v549 = vpop.permute.xlu0 %548
        %550 = vset.pattern.permute.xlu0 4
        %551 = vperm.xlu0 %550, %v162
        %v552 = vpop.permute.xlu0 %551
        %553 = vset.pattern.permute.xlu0 4
        %554 = vperm.xlu0 %553, %v163
        %v555 = vpop.permute.xlu0 %554
        %vm556 = vcmp.eq.s32.totalorder %v147, %v510
        %vm557 = vcmp.eq.s32.totalorder %v147, %v513
        %vm558 = vcmp.eq.s32.totalorder %v147, %v516
        %vm559 = vcmp.eq.s32.totalorder %v147, %v519
        %vm560 = vcmp.eq.s32.totalorder %v147, %v522
        %vm561 = vcmp.eq.s32.totalorder %v147, %v525
        %vm562 = vcmp.eq.s32.totalorder %v147, %v528
        %vm563 = vcmp.eq.s32.totalorder %v147, %v531
        %vm564 = vcmp.eq.s32.totalorder %v147, %v534
        %vm565 = vcmp.eq.s32.totalorder %v147, %v537
        %vm566 = vcmp.eq.s32.totalorder %v147, %v540
        %vm567 = vcmp.eq.s32.totalorder %v147, %v543
        %vm568 = vcmp.eq.s32.totalorder %v147, %v546
        %vm569 = vcmp.eq.s32.totalorder %v147, %v549
        %vm570 = vcmp.eq.s32.totalorder %v147, %v552
        %vm571 = vcmp.eq.s32.totalorder %v147, %v555
        %vm572 = vmor %vm492, %vm556
        %vm573 = vmor %vm493, %vm557
        %vm574 = vmor %vm494, %vm558
        %vm575 = vmor %vm495, %vm559
        %vm576 = vmor %vm496, %vm560
        %vm577 = vmor %vm497, %vm561
        %vm578 = vmor %vm498, %vm562
        %vm579 = vmor %vm499, %vm563
        %vm580 = vmor %vm500, %vm564
        %vm581 = vmor %vm501, %vm565
        %vm582 = vmor %vm502, %vm566
        %vm583 = vmor %vm503, %vm567
        %vm584 = vmor %vm504, %vm568
        %vm585 = vmor %vm505, %vm569
        %vm586 = vmor %vm506, %vm570
        %vm587 = vmor %vm507, %vm571
        %588 = vset.pattern.permute.xlu0 5
        %589 = vperm.xlu0 %588, %v148
        %v590 = vpop.permute.xlu0 %589
        %591 = vset.pattern.permute.xlu0 5
        %592 = vperm.xlu0 %591, %v149
        %v593 = vpop.permute.xlu0 %592
        %594 = vset.pattern.permute.xlu0 5
        %595 = vperm.xlu0 %594, %v150
        %v596 = vpop.permute.xlu0 %595
        %597 = vset.pattern.permute.xlu0 5
        %598 = vperm.xlu0 %597, %v151
        %v599 = vpop.permute.xlu0 %598
        %600 = vset.pattern.permute.xlu0 5
        %601 = vperm.xlu0 %600, %v152
        %v602 = vpop.permute.xlu0 %601
        %603 = vset.pattern.permute.xlu0 5
        %604 = vperm.xlu0 %603, %v153
        %v605 = vpop.permute.xlu0 %604
        %606 = vset.pattern.permute.xlu0 5
        %607 = vperm.xlu0 %606, %v154
        %v608 = vpop.permute.xlu0 %607
        %609 = vset.pattern.permute.xlu0 5
        %610 = vperm.xlu0 %609, %v155
        %v611 = vpop.permute.xlu0 %610
        %612 = vset.pattern.permute.xlu0 5
        %613 = vperm.xlu0 %612, %v156
        %v614 = vpop.permute.xlu0 %613
        %615 = vset.pattern.permute.xlu0 5
        %616 = vperm.xlu0 %615, %v157
        %v617 = vpop.permute.xlu0 %616
        %618 = vset.pattern.permute.xlu0 5
        %619 = vperm.xlu0 %618, %v158
        %v620 = vpop.permute.xlu0 %619
        %621 = vset.pattern.permute.xlu0 5
        %622 = vperm.xlu0 %621, %v159
        %v623 = vpop.permute.xlu0 %622
        %624 = vset.pattern.permute.xlu0 5
        %625 = vperm.xlu0 %624, %v160
        %v626 = vpop.permute.xlu0 %625
        %627 = vset.pattern.permute.xlu0 5
        %628 = vperm.xlu0 %627, %v161
        %v629 = vpop.permute.xlu0 %628
        %630 = vset.pattern.permute.xlu0 5
        %631 = vperm.xlu0 %630, %v162
        %v632 = vpop.permute.xlu0 %631
        %633 = vset.pattern.permute.xlu0 5
        %634 = vperm.xlu0 %633, %v163
        %v635 = vpop.permute.xlu0 %634
        %vm636 = vcmp.eq.s32.totalorder %v147, %v590
        %vm637 = vcmp.eq.s32.totalorder %v147, %v593
        %vm638 = vcmp.eq.s32.totalorder %v147, %v596
        %vm639 = vcmp.eq.s32.totalorder %v147, %v599
        %vm640 = vcmp.eq.s32.totalorder %v147, %v602
        %vm641 = vcmp.eq.s32.totalorder %v147, %v605
        %vm642 = vcmp.eq.s32.totalorder %v147, %v608
        %vm643 = vcmp.eq.s32.totalorder %v147, %v611
        %vm644 = vcmp.eq.s32.totalorder %v147, %v614
        %vm645 = vcmp.eq.s32.totalorder %v147, %v617
        %vm646 = vcmp.eq.s32.totalorder %v147, %v620
        %vm647 = vcmp.eq.s32.totalorder %v147, %v623
        %vm648 = vcmp.eq.s32.totalorder %v147, %v626
        %vm649 = vcmp.eq.s32.totalorder %v147, %v629
        %vm650 = vcmp.eq.s32.totalorder %v147, %v632
        %vm651 = vcmp.eq.s32.totalorder %v147, %v635
        %vm652 = vmor %vm572, %vm636
        %vm653 = vmor %vm573, %vm637
        %vm654 = vmor %vm574, %vm638
        %vm655 = vmor %vm575, %vm639
        %vm656 = vmor %vm576, %vm640
        %vm657 = vmor %vm577, %vm641
        %vm658 = vmor %vm578, %vm642
        %vm659 = vmor %vm579, %vm643
        %vm660 = vmor %vm580, %vm644
        %vm661 = vmor %vm581, %vm645
        %vm662 = vmor %vm582, %vm646
        %vm663 = vmor %vm583, %vm647
        %vm664 = vmor %vm584, %vm648
        %vm665 = vmor %vm585, %vm649
        %vm666 = vmor %vm586, %vm650
        %vm667 = vmor %vm587, %vm651
        %668 = vset.pattern.permute.xlu0 6
        %669 = vperm.xlu0 %668, %v148
        %v670 = vpop.permute.xlu0 %669
        %671 = vset.pattern.permute.xlu0 6
        %672 = vperm.xlu0 %671, %v149
        %v673 = vpop.permute.xlu0 %672
        %674 = vset.pattern.permute.xlu0 6
        %675 = vperm.xlu0 %674, %v150
        %v676 = vpop.permute.xlu0 %675
        %677 = vset.pattern.permute.xlu0 6
        %678 = vperm.xlu0 %677, %v151
        %v679 = vpop.permute.xlu0 %678
        %680 = vset.pattern.permute.xlu0 6
        %681 = vperm.xlu0 %680, %v152
        %v682 = vpop.permute.xlu0 %681
        %683 = vset.pattern.permute.xlu0 6
        %684 = vperm.xlu0 %683, %v153
        %v685 = vpop.permute.xlu0 %684
        %686 = vset.pattern.permute.xlu0 6
        %687 = vperm.xlu0 %686, %v154
        %v688 = vpop.permute.xlu0 %687
        %689 = vset.pattern.permute.xlu0 6
        %690 = vperm.xlu0 %689, %v155
        %v691 = vpop.permute.xlu0 %690
        %692 = vset.pattern.permute.xlu0 6
        %693 = vperm.xlu0 %692, %v156
        %v694 = vpop.permute.xlu0 %693
        %695 = vset.pattern.permute.xlu0 6
        %696 = vperm.xlu0 %695, %v157
        %v697 = vpop.permute.xlu0 %696
        %698 = vset.pattern.permute.xlu0 6
        %699 = vperm.xlu0 %698, %v158
        %v700 = vpop.permute.xlu0 %699
        %701 = vset.pattern.permute.xlu0 6
        %702 = vperm.xlu0 %701, %v159
        %v703 = vpop.permute.xlu0 %702
        %704 = vset.pattern.permute.xlu0 6
        %705 = vperm.xlu0 %704, %v160
        %v706 = vpop.permute.xlu0 %705
        %707 = vset.pattern.permute.xlu0 6
        %708 = vperm.xlu0 %707, %v161
        %v709 = vpop.permute.xlu0 %708
        %710 = vset.pattern.permute.xlu0 6
        %711 = vperm.xlu0 %710, %v162
        %v712 = vpop.permute.xlu0 %711
        %713 = vset.pattern.permute.xlu0 6
        %714 = vperm.xlu0 %713, %v163
        %v715 = vpop.permute.xlu0 %714
        %vm716 = vcmp.eq.s32.totalorder %v147, %v670
        %vm717 = vcmp.eq.s32.totalorder %v147, %v673
        %vm718 = vcmp.eq.s32.totalorder %v147, %v676
        %vm719 = vcmp.eq.s32.totalorder %v147, %v679
        %vm720 = vcmp.eq.s32.totalorder %v147, %v682
        %vm721 = vcmp.eq.s32.totalorder %v147, %v685
        %vm722 = vcmp.eq.s32.totalorder %v147, %v688
        %vm723 = vcmp.eq.s32.totalorder %v147, %v691
        %vm724 = vcmp.eq.s32.totalorder %v147, %v694
        %vm725 = vcmp.eq.s32.totalorder %v147, %v697
        %vm726 = vcmp.eq.s32.totalorder %v147, %v700
        %vm727 = vcmp.eq.s32.totalorder %v147, %v703
        %vm728 = vcmp.eq.s32.totalorder %v147, %v706
        %vm729 = vcmp.eq.s32.totalorder %v147, %v709
        %vm730 = vcmp.eq.s32.totalorder %v147, %v712
        %vm731 = vcmp.eq.s32.totalorder %v147, %v715
        %vm732 = vmor %vm652, %vm716
        %vm733 = vmor %vm653, %vm717
        %vm734 = vmor %vm654, %vm718
        %vm735 = vmor %vm655, %vm719
        %vm736 = vmor %vm656, %vm720
        %vm737 = vmor %vm657, %vm721
        %vm738 = vmor %vm658, %vm722
        %vm739 = vmor %vm659, %vm723
        %vm740 = vmor %vm660, %vm724
        %vm741 = vmor %vm661, %vm725
        %vm742 = vmor %vm662, %vm726
        %vm743 = vmor %vm663, %vm727
        %vm744 = vmor %vm664, %vm728
        %vm745 = vmor %vm665, %vm729
        %vm746 = vmor %vm666, %vm730
        %vm747 = vmor %vm667, %vm731
        %748 = vset.pattern.permute.xlu0 7
        %749 = vperm.xlu0 %748, %v148
        %v750 = vpop.permute.xlu0 %749
        %751 = vset.pattern.permute.xlu0 7
        %752 = vperm.xlu0 %751, %v149
        %v753 = vpop.permute.xlu0 %752
        %754 = vset.pattern.permute.xlu0 7
        %755 = vperm.xlu0 %754, %v150
        %v756 = vpop.permute.xlu0 %755
        %757 = vset.pattern.permute.xlu0 7
        %758 = vperm.xlu0 %757, %v151
        %v759 = vpop.permute.xlu0 %758
        %760 = vset.pattern.permute.xlu0 7
        %761 = vperm.xlu0 %760, %v152
        %v762 = vpop.permute.xlu0 %761
        %763 = vset.pattern.permute.xlu0 7
        %764 = vperm.xlu0 %763, %v153
        %v765 = vpop.permute.xlu0 %764
        %766 = vset.pattern.permute.xlu0 7
        %767 = vperm.xlu0 %766, %v154
        %v768 = vpop.permute.xlu0 %767
        %769 = vset.pattern.permute.xlu0 7
        %770 = vperm.xlu0 %769, %v155
        %v771 = vpop.permute.xlu0 %770
        %772 = vset.pattern.permute.xlu0 7
        %773 = vperm.xlu0 %772, %v156
        %v774 = vpop.permute.xlu0 %773
        %775 = vset.pattern.permute.xlu0 7
        %776 = vperm.xlu0 %775, %v157
        %v777 = vpop.permute.xlu0 %776
        %778 = vset.pattern.permute.xlu0 7
        %779 = vperm.xlu0 %778, %v158
        %v780 = vpop.permute.xlu0 %779
        %781 = vset.pattern.permute.xlu0 7
        %782 = vperm.xlu0 %781, %v159
        %v783 = vpop.permute.xlu0 %782
        %784 = vset.pattern.permute.xlu0 7
        %785 = vperm.xlu0 %784, %v160
        %v786 = vpop.permute.xlu0 %785
        %787 = vset.pattern.permute.xlu0 7
        %788 = vperm.xlu0 %787, %v161
        %v789 = vpop.permute.xlu0 %788
        %790 = vset.pattern.permute.xlu0 7
        %791 = vperm.xlu0 %790, %v162
        %v792 = vpop.permute.xlu0 %791
        %793 = vset.pattern.permute.xlu0 7
        %794 = vperm.xlu0 %793, %v163
        %v795 = vpop.permute.xlu0 %794
        %vm796 = vcmp.eq.s32.totalorder %v147, %v750
        %vm797 = vcmp.eq.s32.totalorder %v147, %v753
        %vm798 = vcmp.eq.s32.totalorder %v147, %v756
        %vm799 = vcmp.eq.s32.totalorder %v147, %v759
        %vm800 = vcmp.eq.s32.totalorder %v147, %v762
        %vm801 = vcmp.eq.s32.totalorder %v147, %v765
        %vm802 = vcmp.eq.s32.totalorder %v147, %v768
        %vm803 = vcmp.eq.s32.totalorder %v147, %v771
        %vm804 = vcmp.eq.s32.totalorder %v147, %v774
        %vm805 = vcmp.eq.s32.totalorder %v147, %v777
        %vm806 = vcmp.eq.s32.totalorder %v147, %v780
        %vm807 = vcmp.eq.s32.totalorder %v147, %v783
        %vm808 = vcmp.eq.s32.totalorder %v147, %v786
        %vm809 = vcmp.eq.s32.totalorder %v147, %v789
        %vm810 = vcmp.eq.s32.totalorder %v147, %v792
        %vm811 = vcmp.eq.s32.totalorder %v147, %v795
        %vm812 = vmor %vm732, %vm796
        %vm813 = vmor %vm733, %vm797
        %vm814 = vmor %vm734, %vm798
        %vm815 = vmor %vm735, %vm799
        %vm816 = vmor %vm736, %vm800
        %vm817 = vmor %vm737, %vm801
        %vm818 = vmor %vm738, %vm802
        %vm819 = vmor %vm739, %vm803
        %vm820 = vmor %vm740, %vm804
        %vm821 = vmor %vm741, %vm805
        %vm822 = vmor %vm742, %vm806
        %vm823 = vmor %vm743, %vm807
        %vm824 = vmor %vm744, %vm808
        %vm825 = vmor %vm745, %vm809
        %vm826 = vmor %vm746, %vm810
        %vm827 = vmor %vm747, %vm811
        %828 = vset.pattern.permute.xlu0 8
        %829 = vperm.xlu0 %828, %v148
        %v830 = vpop.permute.xlu0 %829
        %831 = vset.pattern.permute.xlu0 8
        %832 = vperm.xlu0 %831, %v149
        %v833 = vpop.permute.xlu0 %832
        %834 = vset.pattern.permute.xlu0 8
        %835 = vperm.xlu0 %834, %v150
        %v836 = vpop.permute.xlu0 %835
        %837 = vset.pattern.permute.xlu0 8
        %838 = vperm.xlu0 %837, %v151
        %v839 = vpop.permute.xlu0 %838
        %840 = vset.pattern.permute.xlu0 8
        %841 = vperm.xlu0 %840, %v152
        %v842 = vpop.permute.xlu0 %841
        %843 = vset.pattern.permute.xlu0 8
        %844 = vperm.xlu0 %843, %v153
        %v845 = vpop.permute.xlu0 %844
        %846 = vset.pattern.permute.xlu0 8
        %847 = vperm.xlu0 %846, %v154
        %v848 = vpop.permute.xlu0 %847
        %849 = vset.pattern.permute.xlu0 8
        %850 = vperm.xlu0 %849, %v155
        %v851 = vpop.permute.xlu0 %850
        %852 = vset.pattern.permute.xlu0 8
        %853 = vperm.xlu0 %852, %v156
        %v854 = vpop.permute.xlu0 %853
        %855 = vset.pattern.permute.xlu0 8
        %856 = vperm.xlu0 %855, %v157
        %v857 = vpop.permute.xlu0 %856
        %858 = vset.pattern.permute.xlu0 8
        %859 = vperm.xlu0 %858, %v158
        %v860 = vpop.permute.xlu0 %859
        %861 = vset.pattern.permute.xlu0 8
        %862 = vperm.xlu0 %861, %v159
        %v863 = vpop.permute.xlu0 %862
        %864 = vset.pattern.permute.xlu0 8
        %865 = vperm.xlu0 %864, %v160
        %v866 = vpop.permute.xlu0 %865
        %867 = vset.pattern.permute.xlu0 8
        %868 = vperm.xlu0 %867, %v161
        %v869 = vpop.permute.xlu0 %868
        %870 = vset.pattern.permute.xlu0 8
        %871 = vperm.xlu0 %870, %v162
        %v872 = vpop.permute.xlu0 %871
        %873 = vset.pattern.permute.xlu0 8
        %874 = vperm.xlu0 %873, %v163
        %v875 = vpop.permute.xlu0 %874
        %vm876 = vcmp.eq.s32.totalorder %v147, %v830
        %vm877 = vcmp.eq.s32.totalorder %v147, %v833
        %vm878 = vcmp.eq.s32.totalorder %v147, %v836
        %vm879 = vcmp.eq.s32.totalorder %v147, %v839
        %vm880 = vcmp.eq.s32.totalorder %v147, %v842
        %vm881 = vcmp.eq.s32.totalorder %v147, %v845
        %vm882 = vcmp.eq.s32.totalorder %v147, %v848
        %vm883 = vcmp.eq.s32.totalorder %v147, %v851
        %vm884 = vcmp.eq.s32.totalorder %v147, %v854
        %vm885 = vcmp.eq.s32.totalorder %v147, %v857
        %vm886 = vcmp.eq.s32.totalorder %v147, %v860
        %vm887 = vcmp.eq.s32.totalorder %v147, %v863
        %vm888 = vcmp.eq.s32.totalorder %v147, %v866
        %vm889 = vcmp.eq.s32.totalorder %v147, %v869
        %vm890 = vcmp.eq.s32.totalorder %v147, %v872
        %vm891 = vcmp.eq.s32.totalorder %v147, %v875
        %vm892 = vmor %vm812, %vm876
        %vm893 = vmor %vm813, %vm877
        %vm894 = vmor %vm814, %vm878
        %vm895 = vmor %vm815, %vm879
        %vm896 = vmor %vm816, %vm880
        %vm897 = vmor %vm817, %vm881
        %vm898 = vmor %vm818, %vm882
        %vm899 = vmor %vm819, %vm883
        %vm900 = vmor %vm820, %vm884
        %vm901 = vmor %vm821, %vm885
        %vm902 = vmor %vm822, %vm886
        %vm903 = vmor %vm823, %vm887
        %vm904 = vmor %vm824, %vm888
        %vm905 = vmor %vm825, %vm889
        %vm906 = vmor %vm826, %vm890
        %vm907 = vmor %vm827, %vm891
        %v908 = vsel %vm892, 1, 0
        %v909 = vsel %vm893, 1, 0
        %v910 = vsel %vm894, 1, 0
        %v911 = vsel %vm895, 1, 0
        %v912 = vsel %vm896, 1, 0
        %v913 = vsel %vm897, 1, 0
        %v914 = vsel %vm898, 1, 0
        %v915 = vsel %vm899, 1, 0
        %v916 = vsel %vm900, 1, 0
        %v917 = vsel %vm901, 1, 0
        %v918 = vsel %vm902, 1, 0
        %v919 = vsel %vm903, 1, 0
        %v920 = vsel %vm904, 1, 0
        %v921 = vsel %vm905, 1, 0
        %v922 = vsel %vm906, 1, 0
        %v923 = vsel %vm907, 1, 0
        %v924 = vcvt.s32.f32 %v908
        %v925 = vcvt.s32.f32 %v909
        %v926 = vcvt.s32.f32 %v910
        %v927 = vcvt.s32.f32 %v911
        %v928 = vcvt.s32.f32 %v912
        %v929 = vcvt.s32.f32 %v913
        %v930 = vcvt.s32.f32 %v914
        %v931 = vcvt.s32.f32 %v915
        %v932 = vcvt.s32.f32 %v916
        %v933 = vcvt.s32.f32 %v917
        %v934 = vcvt.s32.f32 %v918
        %v935 = vcvt.s32.f32 %v919
        %v936 = vcvt.s32.f32 %v920
        %v937 = vcvt.s32.f32 %v921
        %v938 = vcvt.s32.f32 %v922
        %v939 = vcvt.s32.f32 %v923
        %v940 = vpack.c.bf16 %v925, %v924
        %v941 = vpack.c.bf16 %v927, %v926
        %v942 = vpack.c.bf16 %v929, %v928
        %v943 = vpack.c.bf16 %v931, %v930
        %v944 = vpack.c.bf16 %v933, %v932
        %v945 = vpack.c.bf16 %v935, %v934
        %v946 = vpack.c.bf16 %v937, %v936
        %v947 = vpack.c.bf16 %v939, %v938
        %v948 = vld [vmem:[%s1 + $0x40] sm:$0xf]
        %v949 = vld [vmem:[%s1 + $0x44] sm:$0xf]
        %v950 = vld [vmem:[%s1 + $0x48] sm:$0xf]
        %v951 = vld [vmem:[%s1 + $0x4c] sm:$0xf]
        %v952 = vld [vmem:[%s1 + $0x50] sm:$0xf]
        %v953 = vld [vmem:[%s1 + $0x54] sm:$0xf]
        %v954 = vld [vmem:[%s1 + $0x58] sm:$0xf]
        %v955 = vld [vmem:[%s1 + $0x5c] sm:$0xf]
        %v956 = vld [vmem:[%s1 + $0x60] sm:$0xf]
        %v957 = vld [vmem:[%s1 + $0x64] sm:$0xf]
        %v958 = vld [vmem:[%s1 + $0x68] sm:$0xf]
        %v959 = vld [vmem:[%s1 + $0x6c] sm:$0xf]
        %v960 = vld [vmem:[%s1 + $0x70] sm:$0xf]
        %v961 = vld [vmem:[%s1 + $0x74] sm:$0xf]
        %v962 = vld [vmem:[%s1 + $0x78] sm:$0xf]
        %v963 = vld [vmem:[%s1 + $0x7c] sm:$0xf]
        %v980 = vunpack.c.l.b16 %v948
        %v981 = vunpack.c.l.b16 %v949
        %v982 = vunpack.c.l.b16 %v950
        %v983 = vunpack.c.l.b16 %v951
        %v984 = vunpack.c.l.b16 %v952
        %v985 = vunpack.c.l.b16 %v953
        %v986 = vunpack.c.l.b16 %v954
        %v987 = vunpack.c.l.b16 %v955
        %v988 = vunpack.c.l.b16 %v956
        %v989 = vunpack.c.l.b16 %v957
        %v990 = vunpack.c.l.b16 %v958
        %v991 = vunpack.c.l.b16 %v959
        %v992 = vunpack.c.l.b16 %v960
        %v993 = vunpack.c.l.b16 %v961
        %v994 = vunpack.c.l.b16 %v962
        %v995 = vunpack.c.l.b16 %v963
        %v996 = vpack.c.b16 %v981, %v980
        %v997 = vpack.c.b16 %v983, %v982
        %v998 = vpack.c.b16 %v985, %v984
        %v999 = vpack.c.b16 %v987, %v986
        %v1000 = vpack.c.b16 %v989, %v988
        %v1001 = vpack.c.b16 %v991, %v990
        %v1002 = vpack.c.b16 %v993, %v992
        %v1003 = vpack.c.b16 %v995, %v994
        %1012 = vmatprep.subr.bf16.mxu0 0
        %1013 = vmatpush1.bf16.msra.mxu0 %v996
        %1014 = vmatprep.subr.bf16.mxu0 0
        %1015 = vmatpush1.bf16.msra.mxu0 %v997
        %1016 = vmatprep.subr.bf16.mxu0 0
        %1017 = vmatpush1.bf16.msra.mxu0 %v998
        %1018 = vmatprep.subr.bf16.mxu0 0
        %1019 = vmatpush1.bf16.msra.mxu0 %v999
        %1020 = vmatprep.subr.bf16.mxu0 0
        %1021 = vmatpush1.bf16.msra.mxu0 %v1000
        %1022 = vmatprep.subr.bf16.mxu0 0
        %1023 = vmatpush1.bf16.msra.mxu0 %v1001
        %1024 = vmatprep.subr.bf16.mxu0 0
        %1025 = vmatpush1.bf16.msra.mxu0 %v1002
        %1026 = vmatprep.subr.bf16.mxu0 0
        %1027 = vmatpush1.bf16.msra.mxu0 %v1003
        %1028 = vmatprep.subr.bf16.mxu0 0
        %1029 = vmatpush1.bf16.msra.mxu0 0
        %1030 = vmatprep.subr.bf16.mxu0 0
        %1031 = vmatpush1.bf16.msra.mxu0 0
        %1032 = vmatprep.subr.bf16.mxu0 0
        %1033 = vmatpush1.bf16.msra.mxu0 0
        %1034 = vmatprep.subr.bf16.mxu0 0
        %1035 = vmatpush1.bf16.msra.mxu0 0
        %1036 = vmatprep.subr.bf16.mxu0 0
        %1037 = vmatpush1.bf16.msra.mxu0 0
        %1038 = vmatprep.subr.bf16.mxu0 0
        %1039 = vmatpush1.bf16.msra.mxu0 0
        %1040 = vmatprep.subr.bf16.mxu0 0
        %1041 = vmatpush1.bf16.msra.mxu0 0
        %1042 = vmatprep.subr.bf16.mxu0 0
        %1043 = vmatpush1.bf16.msra.mxu0 0
        %1044 = vmatprep.mubr.bf16.mxu0 0
        %1045 = vmatmul.mubr.bf16.gmra.mrb[0].mxu0 %v940
        %v1046 = vpop.f32.mrb[0].mxu0
        %v1047 = vadd.f32 0.0, %v1046
        %v1048 = vpop.f32.mrb[0].mxu0
        %v1049 = vpop.f32.mrb[0].mxu0
        %v1050 = vadd.f32 0.0, %v1049
        %v1051 = vpop.f32.mrb[0].mxu0
        %1052 = vmatprep.mubr.bf16.mxu0 0
        %1053 = vmatmul.mubr.bf16.gmra.mrb[0].mxu0 %v941
        %v1054 = vpop.f32.mrb[0].mxu0
        %v1055 = vadd.f32 0.0, %v1054
        %v1056 = vpop.f32.mrb[0].mxu0
        %v1057 = vpop.f32.mrb[0].mxu0
        %v1058 = vadd.f32 0.0, %v1057
        %v1059 = vpop.f32.mrb[0].mxu0
        %1060 = vmatprep.mubr.bf16.mxu0 0
        %1061 = vmatmul.mubr.bf16.gmra.mrb[0].mxu0 %v942
        %v1062 = vpop.f32.mrb[0].mxu0
        %v1063 = vadd.f32 0.0, %v1062
        %v1064 = vpop.f32.mrb[0].mxu0
        %v1065 = vpop.f32.mrb[0].mxu0
        %v1066 = vadd.f32 0.0, %v1065
        %v1067 = vpop.f32.mrb[0].mxu0
        %1068 = vmatprep.mubr.bf16.mxu0 0
        %1069 = vmatmul.mubr.bf16.gmra.mrb[0].mxu0 %v943
        %v1070 = vpop.f32.mrb[0].mxu0
        %v1071 = vadd.f32 0.0, %v1070
        %v1072 = vpop.f32.mrb[0].mxu0
        %v1073 = vpop.f32.mrb[0].mxu0
        %v1074 = vadd.f32 0.0, %v1073
        %v1075 = vpop.f32.mrb[0].mxu0
        %1076 = vmatprep.mubr.bf16.mxu0 0
        %1077 = vmatmul.mubr.bf16.gmra.mrb[0].mxu0 %v944
        %v1078 = vpop.f32.mrb[0].mxu0
        %v1079 = vadd.f32 0.0, %v1078
        %v1080 = vpop.f32.mrb[0].mxu0
        %v1081 = vpop.f32.mrb[0].mxu0
        %v1082 = vadd.f32 0.0, %v1081
        %v1083 = vpop.f32.mrb[0].mxu0
        %1084 = vmatprep.mubr.bf16.mxu0 0
        %1085 = vmatmul.mubr.bf16.gmra.mrb[0].mxu0 %v945
        %v1086 = vpop.f32.mrb[0].mxu0
        %v1087 = vadd.f32 0.0, %v1086
        %v1088 = vpop.f32.mrb[0].mxu0
        %v1089 = vpop.f32.mrb[0].mxu0
        %v1090 = vadd.f32 0.0, %v1089
        %v1091 = vpop.f32.mrb[0].mxu0
        %1092 = vmatprep.mubr.bf16.mxu0 0
        %1093 = vmatmul.mubr.bf16.gmra.mrb[0].mxu0 %v946
        %v1094 = vpop.f32.mrb[0].mxu0
        %v1095 = vadd.f32 0.0, %v1094
        %v1096 = vpop.f32.mrb[0].mxu0
        %v1097 = vpop.f32.mrb[0].mxu0
        %v1098 = vadd.f32 0.0, %v1097
        %v1099 = vpop.f32.mrb[0].mxu0
        %1100 = vmatprep.mubr.bf16.mxu0 0
        %1101 = vmatmul.mubr.bf16.gmra.mrb[0].mxu0 %v947
        %v1102 = vpop.f32.mrb[0].mxu0
        %v1103 = vadd.f32 0.0, %v1102
        %v1104 = vpop.f32.mrb[0].mxu0
        %v1105 = vpop.f32.mrb[0].mxu0
        %v1106 = vadd.f32 0.0, %v1105
        %v1107 = vpop.f32.mrb[0].mxu0
        %1108 = vdwg.mxu0
        %v1125 = vunpack.c.l.b16 %v348
        %v1126 = vunpack.c.l.b16 %v349
        %v1127 = vunpack.c.l.b16 %v350
        %v1128 = vunpack.c.l.b16 %v351
        %v1129 = vunpack.c.l.b16 %v352
        %v1130 = vunpack.c.l.b16 %v353
        %v1131 = vunpack.c.l.b16 %v354
        %v1132 = vunpack.c.l.b16 %v355
        %v1133 = vunpack.c.l.b16 %v356
        %v1134 = vunpack.c.l.b16 %v357
        %v1135 = vunpack.c.l.b16 %v358
        %v1136 = vunpack.c.l.b16 %v359
        %v1137 = vunpack.c.l.b16 %v360
        %v1138 = vunpack.c.l.b16 %v361
        %v1139 = vunpack.c.l.b16 %v362
        %v1140 = vunpack.c.l.b16 %v363
        %v1141 = vpack.c.b16 %v1126, %v1125
        %v1142 = vpack.c.b16 %v1128, %v1127
        %v1143 = vpack.c.b16 %v1130, %v1129
        %v1144 = vpack.c.b16 %v1132, %v1131
        %v1145 = vpack.c.b16 %v1134, %v1133
        %v1146 = vpack.c.b16 %v1136, %v1135
        %v1147 = vpack.c.b16 %v1138, %v1137
        %v1148 = vpack.c.b16 %v1140, %v1139
        %1157 = vmatprep.subr.bf16.mxu0 0
        %1158 = vmatpush1.bf16.msra.mxu0 %v1141
        %1159 = vmatprep.subr.bf16.mxu0 0
        %1160 = vmatpush1.bf16.msra.mxu0 %v1142
        %1161 = vmatprep.subr.bf16.mxu0 0
        %1162 = vmatpush1.bf16.msra.mxu0 %v1143
        %1163 = vmatprep.subr.bf16.mxu0 0
        %1164 = vmatpush1.bf16.msra.mxu0 %v1144
        %1165 = vmatprep.subr.bf16.mxu0 0
        %1166 = vmatpush1.bf16.msra.mxu0 %v1145
        %1167 = vmatprep.subr.bf16.mxu0 0
        %1168 = vmatpush1.bf16.msra.mxu0 %v1146
        %1169 = vmatprep.subr.bf16.mxu0 0
        %1170 = vmatpush1.bf16.msra.mxu0 %v1147
        %1171 = vmatprep.subr.bf16.mxu0 0
        %1172 = vmatpush1.bf16.msra.mxu0 %v1148
        %1173 = vmatprep.subr.bf16.mxu0 0
        %1174 = vmatpush1.bf16.msra.mxu0 0
        %1175 = vmatprep.subr.bf16.mxu0 0
        %1176 = vmatpush1.bf16.msra.mxu0 0
        %1177 = vmatprep.subr.bf16.mxu0 0
        %1178 = vmatpush1.bf16.msra.mxu0 0
        %1179 = vmatprep.subr.bf16.mxu0 0
        %1180 = vmatpush1.bf16.msra.mxu0 0
        %1181 = vmatprep.subr.bf16.mxu0 0
        %1182 = vmatpush1.bf16.msra.mxu0 0
        %1183 = vmatprep.subr.bf16.mxu0 0
        %1184 = vmatpush1.bf16.msra.mxu0 0
        %1185 = vmatprep.subr.bf16.mxu0 0
        %1186 = vmatpush1.bf16.msra.mxu0 0
        %1187 = vmatprep.subr.bf16.mxu0 0
        %1188 = vmatpush1.bf16.msra.mxu0 0
        %1189 = vmatprep.mubr.bf16.mxu0 0
        %1190 = vmatmul.mubr.bf16.gmra.mrb[0].mxu0 %v340
        %v1191 = vpop.f32.mrb[0].mxu0
        %v1192 = vadd.f32 %v1047, %v1191
        %v1193 = vpop.f32.mrb[0].mxu0
        %v1194 = vpop.f32.mrb[0].mxu0
        %v1195 = vadd.f32 %v1050, %v1194
        %v1196 = vpop.f32.mrb[0].mxu0
        %1197 = vmatprep.mubr.bf16.mxu0 0
        %1198 = vmatmul.mubr.bf16.gmra.mrb[0].mxu0 %v341
        %v1199 = vpop.f32.mrb[0].mxu0
        %v1200 = vadd.f32 %v1055, %v1199
        %v1201 = vpop.f32.mrb[0].mxu0
        %v1202 = vpop.f32.mrb[0].mxu0
        %v1203 = vadd.f32 %v1058, %v1202
        %v1204 = vpop.f32.mrb[0].mxu0
        %1205 = vmatprep.mubr.bf16.mxu0 0
        %1206 = vmatmul.mubr.bf16.gmra.mrb[0].mxu0 %v342
        %v1207 = vpop.f32.mrb[0].mxu0
        %v1208 = vadd.f32 %v1063, %v1207
        %v1209 = vpop.f32.mrb[0].mxu0
        %v1210 = vpop.f32.mrb[0].mxu0
        %v1211 = vadd.f32 %v1066, %v1210
        %v1212 = vpop.f32.mrb[0].mxu0
        %1213 = vmatprep.mubr.bf16.mxu0 0
        %1214 = vmatmul.mubr.bf16.gmra.mrb[0].mxu0 %v343
        %v1215 = vpop.f32.mrb[0].mxu0
        %v1216 = vadd.f32 %v1071, %v1215
        %v1217 = vpop.f32.mrb[0].mxu0
        %v1218 = vpop.f32.mrb[0].mxu0
        %v1219 = vadd.f32 %v1074, %v1218
        %v1220 = vpop.f32.mrb[0].mxu0
        %1221 = vmatprep.mubr.bf16.mxu0 0
        %1222 = vmatmul.mubr.bf16.gmra.mrb[0].mxu0 %v344
        %v1223 = vpop.f32.mrb[0].mxu0
        %v1224 = vadd.f32 %v1079, %v1223
        %v1225 = vpop.f32.mrb[0].mxu0
        %v1226 = vpop.f32.mrb[0].mxu0
        %v1227 = vadd.f32 %v1082, %v1226
        %v1228 = vpop.f32.mrb[0].mxu0
        %1229 = vmatprep.mubr.bf16.mxu0 0
        %1230 = vmatmul.mubr.bf16.gmra.mrb[0].mxu0 %v345
        %v1231 = vpop.f32.mrb[0].mxu0
        %v1232 = vadd.f32 %v1087, %v1231
        %v1233 = vpop.f32.mrb[0].mxu0
        %v1234 = vpop.f32.mrb[0].mxu0
        %v1235 = vadd.f32 %v1090, %v1234
        %v1236 = vpop.f32.mrb[0].mxu0
        %1237 = vmatprep.mubr.bf16.mxu0 0
        %1238 = vmatmul.mubr.bf16.gmra.mrb[0].mxu0 %v346
        %v1239 = vpop.f32.mrb[0].mxu0
        %v1240 = vadd.f32 %v1095, %v1239
        %v1241 = vpop.f32.mrb[0].mxu0
        %v1242 = vpop.f32.mrb[0].mxu0
        %v1243 = vadd.f32 %v1098, %v1242
        %v1244 = vpop.f32.mrb[0].mxu0
        %1245 = vmatprep.mubr.bf16.mxu0 0
        %1246 = vmatmul.mubr.bf16.gmra.mrb[0].mxu0 %v347
        %v1247 = vpop.f32.mrb[0].mxu0
        %v1248 = vadd.f32 %v1103, %v1247
        %v1249 = vpop.f32.mrb[0].mxu0
        %v1250 = vpop.f32.mrb[0].mxu0
        %v1251 = vadd.f32 %v1106, %v1250
        %v1252 = vpop.f32.mrb[0].mxu0
        %1253 = vdwg.mxu0
        %1254 = vst [vmem:[%s137] sm:$0xff] %v1192
        %1255 = vst [vmem:[%s137 + $0x8] sm:$0xff] %v1195
        %1256 = vst [vmem:[%s137 + $0x10] sm:$0xff] %v1200
        %1257 = vst [vmem:[%s137 + $0x18] sm:$0xff] %v1203
        %1258 = vst [vmem:[%s137 + $0x20] sm:$0xff] %v1208
        %1259 = vst [vmem:[%s137 + $0x28] sm:$0xff] %v1211
        %1260 = vst [vmem:[%s137 + $0x30] sm:$0xff] %v1216
        %1261 = vst [vmem:[%s137 + $0x38] sm:$0xff] %v1219
        %1262 = vst [vmem:[%s137 + $0x40] sm:$0xff] %v1224
        %1263 = vst [vmem:[%s137 + $0x48] sm:$0xff] %v1227
        %1264 = vst [vmem:[%s137 + $0x50] sm:$0xff] %v1232
        %1265 = vst [vmem:[%s137 + $0x58] sm:$0xff] %v1235
        %1266 = vst [vmem:[%s137 + $0x60] sm:$0xff] %v1240
        %1267 = vst [vmem:[%s137 + $0x68] sm:$0xff] %v1243
        %1268 = vst [vmem:[%s137 + $0x70] sm:$0xff] %v1248
        %1269 = vst [vmem:[%s137 + $0x78] sm:$0xff] %v1251
        %s1270 = scalar_lea.vmem %s142, 128
        %v1271 = vld [vmem:[%s1270] sm:$0xff]
        %v1272 = vld [vmem:[%s1270 + $0x8] sm:$0xff]
        %v1273 = vld [vmem:[%s1270 + $0x10] sm:$0xff]
        %v1274 = vld [vmem:[%s1270 + $0x18] sm:$0xff]
        %v1275 = vld [vmem:[%s1270 + $0x20] sm:$0xff]
        %v1276 = vld [vmem:[%s1270 + $0x28] sm:$0xff]
        %v1277 = vld [vmem:[%s1270 + $0x30] sm:$0xff]
        %v1278 = vld [vmem:[%s1270 + $0x38] sm:$0xff]
        %v1279 = vld [vmem:[%s1270 + $0x40] sm:$0xff]
        %v1280 = vld [vmem:[%s1270 + $0x48] sm:$0xff]
        %v1281 = vld [vmem:[%s1270 + $0x50] sm:$0xff]
        %v1282 = vld [vmem:[%s1270 + $0x58] sm:$0xff]
        %v1283 = vld [vmem:[%s1270 + $0x60] sm:$0xff]
        %v1284 = vld [vmem:[%s1270 + $0x68] sm:$0xff]
        %v1285 = vld [vmem:[%s1270 + $0x70] sm:$0xff]
        %v1286 = vld [vmem:[%s1270 + $0x78] sm:$0xff]
        %1287 = vset.pattern.permute.xlu0 0
        %1288 = vperm.xlu0 %1287, %v1271
        %v1289 = vpop.permute.xlu0 %1288
        %1290 = vset.pattern.permute.xlu0 0
        %1291 = vperm.xlu0 %1290, %v1272
        %v1292 = vpop.permute.xlu0 %1291
        %1293 = vset.pattern.permute.xlu0 0
        %1294 = vperm.xlu0 %1293, %v1273
        %v1295 = vpop.permute.xlu0 %1294
        %1296 = vset.pattern.permute.xlu0 0
        %1297 = vperm.xlu0 %1296, %v1274
        %v1298 = vpop.permute.xlu0 %1297
        %1299 = vset.pattern.permute.xlu0 0
        %1300 = vperm.xlu0 %1299, %v1275
        %v1301 = vpop.permute.xlu0 %1300
        %1302 = vset.pattern.permute.xlu0 0
        %1303 = vperm.xlu0 %1302, %v1276
        %v1304 = vpop.permute.xlu0 %1303
        %1305 = vset.pattern.permute.xlu0 0
        %1306 = vperm.xlu0 %1305, %v1277
        %v1307 = vpop.permute.xlu0 %1306
        %1308 = vset.pattern.permute.xlu0 0
        %1309 = vperm.xlu0 %1308, %v1278
        %v1310 = vpop.permute.xlu0 %1309
        %1311 = vset.pattern.permute.xlu0 0
        %1312 = vperm.xlu0 %1311, %v1279
        %v1313 = vpop.permute.xlu0 %1312
        %1314 = vset.pattern.permute.xlu0 0
        %1315 = vperm.xlu0 %1314, %v1280
        %v1316 = vpop.permute.xlu0 %1315
        %1317 = vset.pattern.permute.xlu0 0
        %1318 = vperm.xlu0 %1317, %v1281
        %v1319 = vpop.permute.xlu0 %1318
        %1320 = vset.pattern.permute.xlu0 0
        %1321 = vperm.xlu0 %1320, %v1282
        %v1322 = vpop.permute.xlu0 %1321
        %1323 = vset.pattern.permute.xlu0 0
        %1324 = vperm.xlu0 %1323, %v1283
        %v1325 = vpop.permute.xlu0 %1324
        %1326 = vset.pattern.permute.xlu0 0
        %1327 = vperm.xlu0 %1326, %v1284
        %v1328 = vpop.permute.xlu0 %1327
        %1329 = vset.pattern.permute.xlu0 0
        %1330 = vperm.xlu0 %1329, %v1285
        %v1331 = vpop.permute.xlu0 %1330
        %1332 = vset.pattern.permute.xlu0 0
        %1333 = vperm.xlu0 %1332, %v1286
        %v1334 = vpop.permute.xlu0 %1333
        %vm1335 = vcmp.eq.s32.totalorder %v147, %v1289
        %vm1336 = vcmp.eq.s32.totalorder %v147, %v1292
        %vm1337 = vcmp.eq.s32.totalorder %v147, %v1295
        %vm1338 = vcmp.eq.s32.totalorder %v147, %v1298
        %vm1339 = vcmp.eq.s32.totalorder %v147, %v1301
        %vm1340 = vcmp.eq.s32.totalorder %v147, %v1304
        %vm1341 = vcmp.eq.s32.totalorder %v147, %v1307
        %vm1342 = vcmp.eq.s32.totalorder %v147, %v1310
        %vm1343 = vcmp.eq.s32.totalorder %v147, %v1313
        %vm1344 = vcmp.eq.s32.totalorder %v147, %v1316
        %vm1345 = vcmp.eq.s32.totalorder %v147, %v1319
        %vm1346 = vcmp.eq.s32.totalorder %v147, %v1322
        %vm1347 = vcmp.eq.s32.totalorder %v147, %v1325
        %vm1348 = vcmp.eq.s32.totalorder %v147, %v1328
        %vm1349 = vcmp.eq.s32.totalorder %v147, %v1331
        %vm1350 = vcmp.eq.s32.totalorder %v147, %v1334
        %1351 = vset.pattern.permute.xlu0 1
        %1352 = vperm.xlu0 %1351, %v1271
        %v1353 = vpop.permute.xlu0 %1352
        %1354 = vset.pattern.permute.xlu0 1
        %1355 = vperm.xlu0 %1354, %v1272
        %v1356 = vpop.permute.xlu0 %1355
        %1357 = vset.pattern.permute.xlu0 1
        %1358 = vperm.xlu0 %1357, %v1273
        %v1359 = vpop.permute.xlu0 %1358
        %1360 = vset.pattern.permute.xlu0 1
        %1361 = vperm.xlu0 %1360, %v1274
        %v1362 = vpop.permute.xlu0 %1361
        %1363 = vset.pattern.permute.xlu0 1
        %1364 = vperm.xlu0 %1363, %v1275
        %v1365 = vpop.permute.xlu0 %1364
        %1366 = vset.pattern.permute.xlu0 1
        %1367 = vperm.xlu0 %1366, %v1276
        %v1368 = vpop.permute.xlu0 %1367
        %1369 = vset.pattern.permute.xlu0 1
        %1370 = vperm.xlu0 %1369, %v1277
        %v1371 = vpop.permute.xlu0 %1370
        %1372 = vset.pattern.permute.xlu0 1
        %1373 = vperm.xlu0 %1372, %v1278
        %v1374 = vpop.permute.xlu0 %1373
        %1375 = vset.pattern.permute.xlu0 1
        %1376 = vperm.xlu0 %1375, %v1279
        %v1377 = vpop.permute.xlu0 %1376
        %1378 = vset.pattern.permute.xlu0 1
        %1379 = vperm.xlu0 %1378, %v1280
        %v1380 = vpop.permute.xlu0 %1379
        %1381 = vset.pattern.permute.xlu0 1
        %1382 = vperm.xlu0 %1381, %v1281
        %v1383 = vpop.permute.xlu0 %1382
        %1384 = vset.pattern.permute.xlu0 1
        %1385 = vperm.xlu0 %1384, %v1282
        %v1386 = vpop.permute.xlu0 %1385
        %1387 = vset.pattern.permute.xlu0 1
        %1388 = vperm.xlu0 %1387, %v1283
        %v1389 = vpop.permute.xlu0 %1388
        %1390 = vset.pattern.permute.xlu0 1
        %1391 = vperm.xlu0 %1390, %v1284
        %v1392 = vpop.permute.xlu0 %1391
        %1393 = vset.pattern.permute.xlu0 1
        %1394 = vperm.xlu0 %1393, %v1285
        %v1395 = vpop.permute.xlu0 %1394
        %1396 = vset.pattern.permute.xlu0 1
        %1397 = vperm.xlu0 %1396, %v1286
        %v1398 = vpop.permute.xlu0 %1397
        %vm1399 = vcmp.eq.s32.totalorder %v147, %v1353
        %vm1400 = vcmp.eq.s32.totalorder %v147, %v1356
        %vm1401 = vcmp.eq.s32.totalorder %v147, %v1359
        %vm1402 = vcmp.eq.s32.totalorder %v147, %v1362
        %vm1403 = vcmp.eq.s32.totalorder %v147, %v1365
        %vm1404 = vcmp.eq.s32.totalorder %v147, %v1368
        %vm1405 = vcmp.eq.s32.totalorder %v147, %v1371
        %vm1406 = vcmp.eq.s32.totalorder %v147, %v1374
        %vm1407 = vcmp.eq.s32.totalorder %v147, %v1377
        %vm1408 = vcmp.eq.s32.totalorder %v147, %v1380
        %vm1409 = vcmp.eq.s32.totalorder %v147, %v1383
        %vm1410 = vcmp.eq.s32.totalorder %v147, %v1386
        %vm1411 = vcmp.eq.s32.totalorder %v147, %v1389
        %vm1412 = vcmp.eq.s32.totalorder %v147, %v1392
        %vm1413 = vcmp.eq.s32.totalorder %v147, %v1395
        %vm1414 = vcmp.eq.s32.totalorder %v147, %v1398
        %vm1415 = vmor %vm1335, %vm1399
        %vm1416 = vmor %vm1336, %vm1400
        %vm1417 = vmor %vm1337, %vm1401
        %vm1418 = vmor %vm1338, %vm1402
        %vm1419 = vmor %vm1339, %vm1403
        %vm1420 = vmor %vm1340, %vm1404
        %vm1421 = vmor %vm1341, %vm1405
        %vm1422 = vmor %vm1342, %vm1406
        %vm1423 = vmor %vm1343, %vm1407
        %vm1424 = vmor %vm1344, %vm1408
        %vm1425 = vmor %vm1345, %vm1409
        %vm1426 = vmor %vm1346, %vm1410
        %vm1427 = vmor %vm1347, %vm1411
        %vm1428 = vmor %vm1348, %vm1412
        %vm1429 = vmor %vm1349, %vm1413
        %vm1430 = vmor %vm1350, %vm1414
        %v1431 = vsel %vm1415, 1, 0
        %v1432 = vsel %vm1416, 1, 0
        %v1433 = vsel %vm1417, 1, 0
        %v1434 = vsel %vm1418, 1, 0
        %v1435 = vsel %vm1419, 1, 0
        %v1436 = vsel %vm1420, 1, 0
        %v1437 = vsel %vm1421, 1, 0
        %v1438 = vsel %vm1422, 1, 0
        %v1439 = vsel %vm1423, 1, 0
        %v1440 = vsel %vm1424, 1, 0
        %v1441 = vsel %vm1425, 1, 0
        %v1442 = vsel %vm1426, 1, 0
        %v1443 = vsel %vm1427, 1, 0
        %v1444 = vsel %vm1428, 1, 0
        %v1445 = vsel %vm1429, 1, 0
        %v1446 = vsel %vm1430, 1, 0
        %v1447 = vcvt.s32.f32 %v1431
        %v1448 = vcvt.s32.f32 %v1432
        %v1449 = vcvt.s32.f32 %v1433
        %v1450 = vcvt.s32.f32 %v1434
        %v1451 = vcvt.s32.f32 %v1435
        %v1452 = vcvt.s32.f32 %v1436
        %v1453 = vcvt.s32.f32 %v1437
        %v1454 = vcvt.s32.f32 %v1438
        %v1455 = vcvt.s32.f32 %v1439
        %v1456 = vcvt.s32.f32 %v1440
        %v1457 = vcvt.s32.f32 %v1441
        %v1458 = vcvt.s32.f32 %v1442
        %v1459 = vcvt.s32.f32 %v1443
        %v1460 = vcvt.s32.f32 %v1444
        %v1461 = vcvt.s32.f32 %v1445
        %v1462 = vcvt.s32.f32 %v1446
        %v1463 = vpack.c.bf16 %v1448, %v1447
        %v1464 = vpack.c.bf16 %v1450, %v1449
        %v1465 = vpack.c.bf16 %v1452, %v1451
        %v1466 = vpack.c.bf16 %v1454, %v1453
        %v1467 = vpack.c.bf16 %v1456, %v1455
        %v1468 = vpack.c.bf16 %v1458, %v1457
        %v1469 = vpack.c.bf16 %v1460, %v1459
        %v1470 = vpack.c.bf16 %v1462, %v1461
        %v1471 = vld [vmem:[%s1] sm:$0xf]
        %v1472 = vld [vmem:[%s1 + $0x4] sm:$0xf]
        %v1473 = vld [vmem:[%s1 + $0x8] sm:$0xf]
        %v1474 = vld [vmem:[%s1 + $0xc] sm:$0xf]
        %v1475 = vld [vmem:[%s1 + $0x10] sm:$0xf]
        %v1476 = vld [vmem:[%s1 + $0x14] sm:$0xf]
        %v1477 = vld [vmem:[%s1 + $0x18] sm:$0xf]
        %v1478 = vld [vmem:[%s1 + $0x1c] sm:$0xf]
        %v1479 = vld [vmem:[%s1 + $0x20] sm:$0xf]
        %v1480 = vld [vmem:[%s1 + $0x24] sm:$0xf]
        %v1481 = vld [vmem:[%s1 + $0x28] sm:$0xf]
        %v1482 = vld [vmem:[%s1 + $0x2c] sm:$0xf]
        %v1483 = vld [vmem:[%s1 + $0x30] sm:$0xf]
        %v1484 = vld [vmem:[%s1 + $0x34] sm:$0xf]
        %v1485 = vld [vmem:[%s1 + $0x38] sm:$0xf]
        %v1486 = vld [vmem:[%s1 + $0x3c] sm:$0xf]
        %1487 = vset.pattern.permute.xlu0 2
        %1488 = vperm.xlu0 %1487, %v1271
        %v1489 = vpop.permute.xlu0 %1488
        %1490 = vset.pattern.permute.xlu0 2
        %1491 = vperm.xlu0 %1490, %v1272
        %v1492 = vpop.permute.xlu0 %1491
        %1493 = vset.pattern.permute.xlu0 2
        %1494 = vperm.xlu0 %1493, %v1273
        %v1495 = vpop.permute.xlu0 %1494
        %1496 = vset.pattern.permute.xlu0 2
        %1497 = vperm.xlu0 %1496, %v1274
        %v1498 = vpop.permute.xlu0 %1497
        %1499 = vset.pattern.permute.xlu0 2
        %1500 = vperm.xlu0 %1499, %v1275
        %v1501 = vpop.permute.xlu0 %1500
        %1502 = vset.pattern.permute.xlu0 2
        %1503 = vperm.xlu0 %1502, %v1276
        %v1504 = vpop.permute.xlu0 %1503
        %1505 = vset.pattern.permute.xlu0 2
        %1506 = vperm.xlu0 %1505, %v1277
        %v1507 = vpop.permute.xlu0 %1506
        %1508 = vset.pattern.permute.xlu0 2
        %1509 = vperm.xlu0 %1508, %v1278
        %v1510 = vpop.permute.xlu0 %1509
        %1511 = vset.pattern.permute.xlu0 2
        %1512 = vperm.xlu0 %1511, %v1279
        %v1513 = vpop.permute.xlu0 %1512
        %1514 = vset.pattern.permute.xlu0 2
        %1515 = vperm.xlu0 %1514, %v1280
        %v1516 = vpop.permute.xlu0 %1515
        %1517 = vset.pattern.permute.xlu0 2
        %1518 = vperm.xlu0 %1517, %v1281
        %v1519 = vpop.permute.xlu0 %1518
        %1520 = vset.pattern.permute.xlu0 2
        %1521 = vperm.xlu0 %1520, %v1282
        %v1522 = vpop.permute.xlu0 %1521
        %1523 = vset.pattern.permute.xlu0 2
        %1524 = vperm.xlu0 %1523, %v1283
        %v1525 = vpop.permute.xlu0 %1524
        %1526 = vset.pattern.permute.xlu0 2
        %1527 = vperm.xlu0 %1526, %v1284
        %v1528 = vpop.permute.xlu0 %1527
        %1529 = vset.pattern.permute.xlu0 2
        %1530 = vperm.xlu0 %1529, %v1285
        %v1531 = vpop.permute.xlu0 %1530
        %1532 = vset.pattern.permute.xlu0 2
        %1533 = vperm.xlu0 %1532, %v1286
        %v1534 = vpop.permute.xlu0 %1533
        %vm1535 = vcmp.eq.s32.totalorder %v147, %v1489
        %vm1536 = vcmp.eq.s32.totalorder %v147, %v1492
        %vm1537 = vcmp.eq.s32.totalorder %v147, %v1495
        %vm1538 = vcmp.eq.s32.totalorder %v147, %v1498
        %vm1539 = vcmp.eq.s32.totalorder %v147, %v1501
        %vm1540 = vcmp.eq.s32.totalorder %v147, %v1504
        %vm1541 = vcmp.eq.s32.totalorder %v147, %v1507
        %vm1542 = vcmp.eq.s32.totalorder %v147, %v1510
        %vm1543 = vcmp.eq.s32.totalorder %v147, %v1513
        %vm1544 = vcmp.eq.s32.totalorder %v147, %v1516
        %vm1545 = vcmp.eq.s32.totalorder %v147, %v1519
        %vm1546 = vcmp.eq.s32.totalorder %v147, %v1522
        %vm1547 = vcmp.eq.s32.totalorder %v147, %v1525
        %vm1548 = vcmp.eq.s32.totalorder %v147, %v1528
        %vm1549 = vcmp.eq.s32.totalorder %v147, %v1531
        %vm1550 = vcmp.eq.s32.totalorder %v147, %v1534
        %1551 = vset.pattern.permute.xlu0 3
        %1552 = vperm.xlu0 %1551, %v1271
        %v1553 = vpop.permute.xlu0 %1552
        %1554 = vset.pattern.permute.xlu0 3
        %1555 = vperm.xlu0 %1554, %v1272
        %v1556 = vpop.permute.xlu0 %1555
        %1557 = vset.pattern.permute.xlu0 3
        %1558 = vperm.xlu0 %1557, %v1273
        %v1559 = vpop.permute.xlu0 %1558
        %1560 = vset.pattern.permute.xlu0 3
        %1561 = vperm.xlu0 %1560, %v1274
        %v1562 = vpop.permute.xlu0 %1561
        %1563 = vset.pattern.permute.xlu0 3
        %1564 = vperm.xlu0 %1563, %v1275
        %v1565 = vpop.permute.xlu0 %1564
        %1566 = vset.pattern.permute.xlu0 3
        %1567 = vperm.xlu0 %1566, %v1276
        %v1568 = vpop.permute.xlu0 %1567
        %1569 = vset.pattern.permute.xlu0 3
        %1570 = vperm.xlu0 %1569, %v1277
        %v1571 = vpop.permute.xlu0 %1570
        %1572 = vset.pattern.permute.xlu0 3
        %1573 = vperm.xlu0 %1572, %v1278
        %v1574 = vpop.permute.xlu0 %1573
        %1575 = vset.pattern.permute.xlu0 3
        %1576 = vperm.xlu0 %1575, %v1279
        %v1577 = vpop.permute.xlu0 %1576
        %1578 = vset.pattern.permute.xlu0 3
        %1579 = vperm.xlu0 %1578, %v1280
        %v1580 = vpop.permute.xlu0 %1579
        %1581 = vset.pattern.permute.xlu0 3
        %1582 = vperm.xlu0 %1581, %v1281
        %v1583 = vpop.permute.xlu0 %1582
        %1584 = vset.pattern.permute.xlu0 3
        %1585 = vperm.xlu0 %1584, %v1282
        %v1586 = vpop.permute.xlu0 %1585
        %1587 = vset.pattern.permute.xlu0 3
        %1588 = vperm.xlu0 %1587, %v1283
        %v1589 = vpop.permute.xlu0 %1588
        %1590 = vset.pattern.permute.xlu0 3
        %1591 = vperm.xlu0 %1590, %v1284
        %v1592 = vpop.permute.xlu0 %1591
        %1593 = vset.pattern.permute.xlu0 3
        %1594 = vperm.xlu0 %1593, %v1285
        %v1595 = vpop.permute.xlu0 %1594
        %1596 = vset.pattern.permute.xlu0 3
        %1597 = vperm.xlu0 %1596, %v1286
        %v1598 = vpop.permute.xlu0 %1597
        %vm1599 = vcmp.eq.s32.totalorder %v147, %v1553
        %vm1600 = vcmp.eq.s32.totalorder %v147, %v1556
        %vm1601 = vcmp.eq.s32.totalorder %v147, %v1559
        %vm1602 = vcmp.eq.s32.totalorder %v147, %v1562
        %vm1603 = vcmp.eq.s32.totalorder %v147, %v1565
        %vm1604 = vcmp.eq.s32.totalorder %v147, %v1568
        %vm1605 = vcmp.eq.s32.totalorder %v147, %v1571
        %vm1606 = vcmp.eq.s32.totalorder %v147, %v1574
        %vm1607 = vcmp.eq.s32.totalorder %v147, %v1577
        %vm1608 = vcmp.eq.s32.totalorder %v147, %v1580
        %vm1609 = vcmp.eq.s32.totalorder %v147, %v1583
        %vm1610 = vcmp.eq.s32.totalorder %v147, %v1586
        %vm1611 = vcmp.eq.s32.totalorder %v147, %v1589
        %vm1612 = vcmp.eq.s32.totalorder %v147, %v1592
        %vm1613 = vcmp.eq.s32.totalorder %v147, %v1595
        %vm1614 = vcmp.eq.s32.totalorder %v147, %v1598
        %vm1615 = vmor %vm1535, %vm1599
        %vm1616 = vmor %vm1536, %vm1600
        %vm1617 = vmor %vm1537, %vm1601
        %vm1618 = vmor %vm1538, %vm1602
        %vm1619 = vmor %vm1539, %vm1603
        %vm1620 = vmor %vm1540, %vm1604
        %vm1621 = vmor %vm1541, %vm1605
        %vm1622 = vmor %vm1542, %vm1606
        %vm1623 = vmor %vm1543, %vm1607
        %vm1624 = vmor %vm1544, %vm1608
        %vm1625 = vmor %vm1545, %vm1609
        %vm1626 = vmor %vm1546, %vm1610
        %vm1627 = vmor %vm1547, %vm1611
        %vm1628 = vmor %vm1548, %vm1612
        %vm1629 = vmor %vm1549, %vm1613
        %vm1630 = vmor %vm1550, %vm1614
        %1631 = vset.pattern.permute.xlu0 4
        %1632 = vperm.xlu0 %1631, %v1271
        %v1633 = vpop.permute.xlu0 %1632
        %1634 = vset.pattern.permute.xlu0 4
        %1635 = vperm.xlu0 %1634, %v1272
        %v1636 = vpop.permute.xlu0 %1635
        %1637 = vset.pattern.permute.xlu0 4
        %1638 = vperm.xlu0 %1637, %v1273
        %v1639 = vpop.permute.xlu0 %1638
        %1640 = vset.pattern.permute.xlu0 4
        %1641 = vperm.xlu0 %1640, %v1274
        %v1642 = vpop.permute.xlu0 %1641
        %1643 = vset.pattern.permute.xlu0 4
        %1644 = vperm.xlu0 %1643, %v1275
        %v1645 = vpop.permute.xlu0 %1644
        %1646 = vset.pattern.permute.xlu0 4
        %1647 = vperm.xlu0 %1646, %v1276
        %v1648 = vpop.permute.xlu0 %1647
        %1649 = vset.pattern.permute.xlu0 4
        %1650 = vperm.xlu0 %1649, %v1277
        %v1651 = vpop.permute.xlu0 %1650
        %1652 = vset.pattern.permute.xlu0 4
        %1653 = vperm.xlu0 %1652, %v1278
        %v1654 = vpop.permute.xlu0 %1653
        %1655 = vset.pattern.permute.xlu0 4
        %1656 = vperm.xlu0 %1655, %v1279
        %v1657 = vpop.permute.xlu0 %1656
        %1658 = vset.pattern.permute.xlu0 4
        %1659 = vperm.xlu0 %1658, %v1280
        %v1660 = vpop.permute.xlu0 %1659
        %1661 = vset.pattern.permute.xlu0 4
        %1662 = vperm.xlu0 %1661, %v1281
        %v1663 = vpop.permute.xlu0 %1662
        %1664 = vset.pattern.permute.xlu0 4
        %1665 = vperm.xlu0 %1664, %v1282
        %v1666 = vpop.permute.xlu0 %1665
        %1667 = vset.pattern.permute.xlu0 4
        %1668 = vperm.xlu0 %1667, %v1283
        %v1669 = vpop.permute.xlu0 %1668
        %1670 = vset.pattern.permute.xlu0 4
        %1671 = vperm.xlu0 %1670, %v1284
        %v1672 = vpop.permute.xlu0 %1671
        %1673 = vset.pattern.permute.xlu0 4
        %1674 = vperm.xlu0 %1673, %v1285
        %v1675 = vpop.permute.xlu0 %1674
        %1676 = vset.pattern.permute.xlu0 4
        %1677 = vperm.xlu0 %1676, %v1286
        %v1678 = vpop.permute.xlu0 %1677
        %vm1679 = vcmp.eq.s32.totalorder %v147, %v1633
        %vm1680 = vcmp.eq.s32.totalorder %v147, %v1636
        %vm1681 = vcmp.eq.s32.totalorder %v147, %v1639
        %vm1682 = vcmp.eq.s32.totalorder %v147, %v1642
        %vm1683 = vcmp.eq.s32.totalorder %v147, %v1645
        %vm1684 = vcmp.eq.s32.totalorder %v147, %v1648
        %vm1685 = vcmp.eq.s32.totalorder %v147, %v1651
        %vm1686 = vcmp.eq.s32.totalorder %v147, %v1654
        %vm1687 = vcmp.eq.s32.totalorder %v147, %v1657
        %vm1688 = vcmp.eq.s32.totalorder %v147, %v1660
        %vm1689 = vcmp.eq.s32.totalorder %v147, %v1663
        %vm1690 = vcmp.eq.s32.totalorder %v147, %v1666
        %vm1691 = vcmp.eq.s32.totalorder %v147, %v1669
        %vm1692 = vcmp.eq.s32.totalorder %v147, %v1672
        %vm1693 = vcmp.eq.s32.totalorder %v147, %v1675
        %vm1694 = vcmp.eq.s32.totalorder %v147, %v1678
        %vm1695 = vmor %vm1615, %vm1679
        %vm1696 = vmor %vm1616, %vm1680
        %vm1697 = vmor %vm1617, %vm1681
        %vm1698 = vmor %vm1618, %vm1682
        %vm1699 = vmor %vm1619, %vm1683
        %vm1700 = vmor %vm1620, %vm1684
        %vm1701 = vmor %vm1621, %vm1685
        %vm1702 = vmor %vm1622, %vm1686
        %vm1703 = vmor %vm1623, %vm1687
        %vm1704 = vmor %vm1624, %vm1688
        %vm1705 = vmor %vm1625, %vm1689
        %vm1706 = vmor %vm1626, %vm1690
        %vm1707 = vmor %vm1627, %vm1691
        %vm1708 = vmor %vm1628, %vm1692
        %vm1709 = vmor %vm1629, %vm1693
        %vm1710 = vmor %vm1630, %vm1694
        %1711 = vset.pattern.permute.xlu0 5
        %1712 = vperm.xlu0 %1711, %v1271
        %v1713 = vpop.permute.xlu0 %1712
        %1714 = vset.pattern.permute.xlu0 5
        %1715 = vperm.xlu0 %1714, %v1272
        %v1716 = vpop.permute.xlu0 %1715
        %1717 = vset.pattern.permute.xlu0 5
        %1718 = vperm.xlu0 %1717, %v1273
        %v1719 = vpop.permute.xlu0 %1718
        %1720 = vset.pattern.permute.xlu0 5
        %1721 = vperm.xlu0 %1720, %v1274
        %v1722 = vpop.permute.xlu0 %1721
        %1723 = vset.pattern.permute.xlu0 5
        %1724 = vperm.xlu0 %1723, %v1275
        %v1725 = vpop.permute.xlu0 %1724
        %1726 = vset.pattern.permute.xlu0 5
        %1727 = vperm.xlu0 %1726, %v1276
        %v1728 = vpop.permute.xlu0 %1727
        %1729 = vset.pattern.permute.xlu0 5
        %1730 = vperm.xlu0 %1729, %v1277
        %v1731 = vpop.permute.xlu0 %1730
        %1732 = vset.pattern.permute.xlu0 5
        %1733 = vperm.xlu0 %1732, %v1278
        %v1734 = vpop.permute.xlu0 %1733
        %1735 = vset.pattern.permute.xlu0 5
        %1736 = vperm.xlu0 %1735, %v1279
        %v1737 = vpop.permute.xlu0 %1736
        %1738 = vset.pattern.permute.xlu0 5
        %1739 = vperm.xlu0 %1738, %v1280
        %v1740 = vpop.permute.xlu0 %1739
        %1741 = vset.pattern.permute.xlu0 5
        %1742 = vperm.xlu0 %1741, %v1281
        %v1743 = vpop.permute.xlu0 %1742
        %1744 = vset.pattern.permute.xlu0 5
        %1745 = vperm.xlu0 %1744, %v1282
        %v1746 = vpop.permute.xlu0 %1745
        %1747 = vset.pattern.permute.xlu0 5
        %1748 = vperm.xlu0 %1747, %v1283
        %v1749 = vpop.permute.xlu0 %1748
        %1750 = vset.pattern.permute.xlu0 5
        %1751 = vperm.xlu0 %1750, %v1284
        %v1752 = vpop.permute.xlu0 %1751
        %1753 = vset.pattern.permute.xlu0 5
        %1754 = vperm.xlu0 %1753, %v1285
        %v1755 = vpop.permute.xlu0 %1754
        %1756 = vset.pattern.permute.xlu0 5
        %1757 = vperm.xlu0 %1756, %v1286
        %v1758 = vpop.permute.xlu0 %1757
        %vm1759 = vcmp.eq.s32.totalorder %v147, %v1713
        %vm1760 = vcmp.eq.s32.totalorder %v147, %v1716
        %vm1761 = vcmp.eq.s32.totalorder %v147, %v1719
        %vm1762 = vcmp.eq.s32.totalorder %v147, %v1722
        %vm1763 = vcmp.eq.s32.totalorder %v147, %v1725
        %vm1764 = vcmp.eq.s32.totalorder %v147, %v1728
        %vm1765 = vcmp.eq.s32.totalorder %v147, %v1731
        %vm1766 = vcmp.eq.s32.totalorder %v147, %v1734
        %vm1767 = vcmp.eq.s32.totalorder %v147, %v1737
        %vm1768 = vcmp.eq.s32.totalorder %v147, %v1740
        %vm1769 = vcmp.eq.s32.totalorder %v147, %v1743
        %vm1770 = vcmp.eq.s32.totalorder %v147, %v1746
        %vm1771 = vcmp.eq.s32.totalorder %v147, %v1749
        %vm1772 = vcmp.eq.s32.totalorder %v147, %v1752
        %vm1773 = vcmp.eq.s32.totalorder %v147, %v1755
        %vm1774 = vcmp.eq.s32.totalorder %v147, %v1758
        %vm1775 = vmor %vm1695, %vm1759
        %vm1776 = vmor %vm1696, %vm1760
        %vm1777 = vmor %vm1697, %vm1761
        %vm1778 = vmor %vm1698, %vm1762
        %vm1779 = vmor %vm1699, %vm1763
        %vm1780 = vmor %vm1700, %vm1764
        %vm1781 = vmor %vm1701, %vm1765
        %vm1782 = vmor %vm1702, %vm1766
        %vm1783 = vmor %vm1703, %vm1767
        %vm1784 = vmor %vm1704, %vm1768
        %vm1785 = vmor %vm1705, %vm1769
        %vm1786 = vmor %vm1706, %vm1770
        %vm1787 = vmor %vm1707, %vm1771
        %vm1788 = vmor %vm1708, %vm1772
        %vm1789 = vmor %vm1709, %vm1773
        %vm1790 = vmor %vm1710, %vm1774
        %1791 = vset.pattern.permute.xlu0 6
        %1792 = vperm.xlu0 %1791, %v1271
        %v1793 = vpop.permute.xlu0 %1792
        %1794 = vset.pattern.permute.xlu0 6
        %1795 = vperm.xlu0 %1794, %v1272
        %v1796 = vpop.permute.xlu0 %1795
        %1797 = vset.pattern.permute.xlu0 6
        %1798 = vperm.xlu0 %1797, %v1273
        %v1799 = vpop.permute.xlu0 %1798
        %1800 = vset.pattern.permute.xlu0 6
        %1801 = vperm.xlu0 %1800, %v1274
        %v1802 = vpop.permute.xlu0 %1801
        %1803 = vset.pattern.permute.xlu0 6
        %1804 = vperm.xlu0 %1803, %v1275
        %v1805 = vpop.permute.xlu0 %1804
        %1806 = vset.pattern.permute.xlu0 6
        %1807 = vperm.xlu0 %1806, %v1276
        %v1808 = vpop.permute.xlu0 %1807
        %1809 = vset.pattern.permute.xlu0 6
        %1810 = vperm.xlu0 %1809, %v1277
        %v1811 = vpop.permute.xlu0 %1810
        %1812 = vset.pattern.permute.xlu0 6
        %1813 = vperm.xlu0 %1812, %v1278
        %v1814 = vpop.permute.xlu0 %1813
        %1815 = vset.pattern.permute.xlu0 6
        %1816 = vperm.xlu0 %1815, %v1279
        %v1817 = vpop.permute.xlu0 %1816
        %1818 = vset.pattern.permute.xlu0 6
        %1819 = vperm.xlu0 %1818, %v1280
        %v1820 = vpop.permute.xlu0 %1819
        %1821 = vset.pattern.permute.xlu0 6
        %1822 = vperm.xlu0 %1821, %v1281
        %v1823 = vpop.permute.xlu0 %1822
        %1824 = vset.pattern.permute.xlu0 6
        %1825 = vperm.xlu0 %1824, %v1282
        %v1826 = vpop.permute.xlu0 %1825
        %1827 = vset.pattern.permute.xlu0 6
        %1828 = vperm.xlu0 %1827, %v1283
        %v1829 = vpop.permute.xlu0 %1828
        %1830 = vset.pattern.permute.xlu0 6
        %1831 = vperm.xlu0 %1830, %v1284
        %v1832 = vpop.permute.xlu0 %1831
        %1833 = vset.pattern.permute.xlu0 6
        %1834 = vperm.xlu0 %1833, %v1285
        %v1835 = vpop.permute.xlu0 %1834
        %1836 = vset.pattern.permute.xlu0 6
        %1837 = vperm.xlu0 %1836, %v1286
        %v1838 = vpop.permute.xlu0 %1837
        %vm1839 = vcmp.eq.s32.totalorder %v147, %v1793
        %vm1840 = vcmp.eq.s32.totalorder %v147, %v1796
        %vm1841 = vcmp.eq.s32.totalorder %v147, %v1799
        %vm1842 = vcmp.eq.s32.totalorder %v147, %v1802
        %vm1843 = vcmp.eq.s32.totalorder %v147, %v1805
        %vm1844 = vcmp.eq.s32.totalorder %v147, %v1808
        %vm1845 = vcmp.eq.s32.totalorder %v147, %v1811
        %vm1846 = vcmp.eq.s32.totalorder %v147, %v1814
        %vm1847 = vcmp.eq.s32.totalorder %v147, %v1817
        %vm1848 = vcmp.eq.s32.totalorder %v147, %v1820
        %vm1849 = vcmp.eq.s32.totalorder %v147, %v1823
        %vm1850 = vcmp.eq.s32.totalorder %v147, %v1826
        %vm1851 = vcmp.eq.s32.totalorder %v147, %v1829
        %vm1852 = vcmp.eq.s32.totalorder %v147, %v1832
        %vm1853 = vcmp.eq.s32.totalorder %v147, %v1835
        %vm1854 = vcmp.eq.s32.totalorder %v147, %v1838
        %vm1855 = vmor %vm1775, %vm1839
        %vm1856 = vmor %vm1776, %vm1840
        %vm1857 = vmor %vm1777, %vm1841
        %vm1858 = vmor %vm1778, %vm1842
        %vm1859 = vmor %vm1779, %vm1843
        %vm1860 = vmor %vm1780, %vm1844
        %vm1861 = vmor %vm1781, %vm1845
        %vm1862 = vmor %vm1782, %vm1846
        %vm1863 = vmor %vm1783, %vm1847
        %vm1864 = vmor %vm1784, %vm1848
        %vm1865 = vmor %vm1785, %vm1849
        %vm1866 = vmor %vm1786, %vm1850
        %vm1867 = vmor %vm1787, %vm1851
        %vm1868 = vmor %vm1788, %vm1852
        %vm1869 = vmor %vm1789, %vm1853
        %vm1870 = vmor %vm1790, %vm1854
        %1871 = vset.pattern.permute.xlu0 7
        %1872 = vperm.xlu0 %1871, %v1271
        %v1873 = vpop.permute.xlu0 %1872
        %1874 = vset.pattern.permute.xlu0 7
        %1875 = vperm.xlu0 %1874, %v1272
        %v1876 = vpop.permute.xlu0 %1875
        %1877 = vset.pattern.permute.xlu0 7
        %1878 = vperm.xlu0 %1877, %v1273
        %v1879 = vpop.permute.xlu0 %1878
        %1880 = vset.pattern.permute.xlu0 7
        %1881 = vperm.xlu0 %1880, %v1274
        %v1882 = vpop.permute.xlu0 %1881
        %1883 = vset.pattern.permute.xlu0 7
        %1884 = vperm.xlu0 %1883, %v1275
        %v1885 = vpop.permute.xlu0 %1884
        %1886 = vset.pattern.permute.xlu0 7
        %1887 = vperm.xlu0 %1886, %v1276
        %v1888 = vpop.permute.xlu0 %1887
        %1889 = vset.pattern.permute.xlu0 7
        %1890 = vperm.xlu0 %1889, %v1277
        %v1891 = vpop.permute.xlu0 %1890
        %1892 = vset.pattern.permute.xlu0 7
        %1893 = vperm.xlu0 %1892, %v1278
        %v1894 = vpop.permute.xlu0 %1893
        %1895 = vset.pattern.permute.xlu0 7
        %1896 = vperm.xlu0 %1895, %v1279
        %v1897 = vpop.permute.xlu0 %1896
        %1898 = vset.pattern.permute.xlu0 7
        %1899 = vperm.xlu0 %1898, %v1280
        %v1900 = vpop.permute.xlu0 %1899
        %1901 = vset.pattern.permute.xlu0 7
        %1902 = vperm.xlu0 %1901, %v1281
        %v1903 = vpop.permute.xlu0 %1902
        %1904 = vset.pattern.permute.xlu0 7
        %1905 = vperm.xlu0 %1904, %v1282
        %v1906 = vpop.permute.xlu0 %1905
        %1907 = vset.pattern.permute.xlu0 7
        %1908 = vperm.xlu0 %1907, %v1283
        %v1909 = vpop.permute.xlu0 %1908
        %1910 = vset.pattern.permute.xlu0 7
        %1911 = vperm.xlu0 %1910, %v1284
        %v1912 = vpop.permute.xlu0 %1911
        %1913 = vset.pattern.permute.xlu0 7
        %1914 = vperm.xlu0 %1913, %v1285
        %v1915 = vpop.permute.xlu0 %1914
        %1916 = vset.pattern.permute.xlu0 7
        %1917 = vperm.xlu0 %1916, %v1286
        %v1918 = vpop.permute.xlu0 %1917
        %vm1919 = vcmp.eq.s32.totalorder %v147, %v1873
        %vm1920 = vcmp.eq.s32.totalorder %v147, %v1876
        %vm1921 = vcmp.eq.s32.totalorder %v147, %v1879
        %vm1922 = vcmp.eq.s32.totalorder %v147, %v1882
        %vm1923 = vcmp.eq.s32.totalorder %v147, %v1885
        %vm1924 = vcmp.eq.s32.totalorder %v147, %v1888
        %vm1925 = vcmp.eq.s32.totalorder %v147, %v1891
        %vm1926 = vcmp.eq.s32.totalorder %v147, %v1894
        %vm1927 = vcmp.eq.s32.totalorder %v147, %v1897
        %vm1928 = vcmp.eq.s32.totalorder %v147, %v1900
        %vm1929 = vcmp.eq.s32.totalorder %v147, %v1903
        %vm1930 = vcmp.eq.s32.totalorder %v147, %v1906
        %vm1931 = vcmp.eq.s32.totalorder %v147, %v1909
        %vm1932 = vcmp.eq.s32.totalorder %v147, %v1912
        %vm1933 = vcmp.eq.s32.totalorder %v147, %v1915
        %vm1934 = vcmp.eq.s32.totalorder %v147, %v1918
        %vm1935 = vmor %vm1855, %vm1919
        %vm1936 = vmor %vm1856, %vm1920
        %vm1937 = vmor %vm1857, %vm1921
        %vm1938 = vmor %vm1858, %vm1922
        %vm1939 = vmor %vm1859, %vm1923
        %vm1940 = vmor %vm1860, %vm1924
        %vm1941 = vmor %vm1861, %vm1925
        %vm1942 = vmor %vm1862, %vm1926
        %vm1943 = vmor %vm1863, %vm1927
        %vm1944 = vmor %vm1864, %vm1928
        %vm1945 = vmor %vm1865, %vm1929
        %vm1946 = vmor %vm1866, %vm1930
        %vm1947 = vmor %vm1867, %vm1931
        %vm1948 = vmor %vm1868, %vm1932
        %vm1949 = vmor %vm1869, %vm1933
        %vm1950 = vmor %vm1870, %vm1934
        %1951 = vset.pattern.permute.xlu0 8
        %1952 = vperm.xlu0 %1951, %v1271
        %v1953 = vpop.permute.xlu0 %1952
        %1954 = vset.pattern.permute.xlu0 8
        %1955 = vperm.xlu0 %1954, %v1272
        %v1956 = vpop.permute.xlu0 %1955
        %1957 = vset.pattern.permute.xlu0 8
        %1958 = vperm.xlu0 %1957, %v1273
        %v1959 = vpop.permute.xlu0 %1958
        %1960 = vset.pattern.permute.xlu0 8
        %1961 = vperm.xlu0 %1960, %v1274
        %v1962 = vpop.permute.xlu0 %1961
        %1963 = vset.pattern.permute.xlu0 8
        %1964 = vperm.xlu0 %1963, %v1275
        %v1965 = vpop.permute.xlu0 %1964
        %1966 = vset.pattern.permute.xlu0 8
        %1967 = vperm.xlu0 %1966, %v1276
        %v1968 = vpop.permute.xlu0 %1967
        %1969 = vset.pattern.permute.xlu0 8
        %1970 = vperm.xlu0 %1969, %v1277
        %v1971 = vpop.permute.xlu0 %1970
        %1972 = vset.pattern.permute.xlu0 8
        %1973 = vperm.xlu0 %1972, %v1278
        %v1974 = vpop.permute.xlu0 %1973
        %1975 = vset.pattern.permute.xlu0 8
        %1976 = vperm.xlu0 %1975, %v1279
        %v1977 = vpop.permute.xlu0 %1976
        %1978 = vset.pattern.permute.xlu0 8
        %1979 = vperm.xlu0 %1978, %v1280
        %v1980 = vpop.permute.xlu0 %1979
        %1981 = vset.pattern.permute.xlu0 8
        %1982 = vperm.xlu0 %1981, %v1281
        %v1983 = vpop.permute.xlu0 %1982
        %1984 = vset.pattern.permute.xlu0 8
        %1985 = vperm.xlu0 %1984, %v1282
        %v1986 = vpop.permute.xlu0 %1985
        %1987 = vset.pattern.permute.xlu0 8
        %1988 = vperm.xlu0 %1987, %v1283
        %v1989 = vpop.permute.xlu0 %1988
        %1990 = vset.pattern.permute.xlu0 8
        %1991 = vperm.xlu0 %1990, %v1284
        %v1992 = vpop.permute.xlu0 %1991
        %1993 = vset.pattern.permute.xlu0 8
        %1994 = vperm.xlu0 %1993, %v1285
        %v1995 = vpop.permute.xlu0 %1994
        %1996 = vset.pattern.permute.xlu0 8
        %1997 = vperm.xlu0 %1996, %v1286
        %v1998 = vpop.permute.xlu0 %1997
        %vm1999 = vcmp.eq.s32.totalorder %v147, %v1953
        %vm2000 = vcmp.eq.s32.totalorder %v147, %v1956
        %vm2001 = vcmp.eq.s32.totalorder %v147, %v1959
        %vm2002 = vcmp.eq.s32.totalorder %v147, %v1962
        %vm2003 = vcmp.eq.s32.totalorder %v147, %v1965
        %vm2004 = vcmp.eq.s32.totalorder %v147, %v1968
        %vm2005 = vcmp.eq.s32.totalorder %v147, %v1971
        %vm2006 = vcmp.eq.s32.totalorder %v147, %v1974
        %vm2007 = vcmp.eq.s32.totalorder %v147, %v1977
        %vm2008 = vcmp.eq.s32.totalorder %v147, %v1980
        %vm2009 = vcmp.eq.s32.totalorder %v147, %v1983
        %vm2010 = vcmp.eq.s32.totalorder %v147, %v1986
        %vm2011 = vcmp.eq.s32.totalorder %v147, %v1989
        %vm2012 = vcmp.eq.s32.totalorder %v147, %v1992
        %vm2013 = vcmp.eq.s32.totalorder %v147, %v1995
        %vm2014 = vcmp.eq.s32.totalorder %v147, %v1998
        %vm2015 = vmor %vm1935, %vm1999
        %vm2016 = vmor %vm1936, %vm2000
        %vm2017 = vmor %vm1937, %vm2001
        %vm2018 = vmor %vm1938, %vm2002
        %vm2019 = vmor %vm1939, %vm2003
        %vm2020 = vmor %vm1940, %vm2004
        %vm2021 = vmor %vm1941, %vm2005
        %vm2022 = vmor %vm1942, %vm2006
        %vm2023 = vmor %vm1943, %vm2007
        %vm2024 = vmor %vm1944, %vm2008
        %vm2025 = vmor %vm1945, %vm2009
        %vm2026 = vmor %vm1946, %vm2010
        %vm2027 = vmor %vm1947, %vm2011
        %vm2028 = vmor %vm1948, %vm2012
        %vm2029 = vmor %vm1949, %vm2013
        %vm2030 = vmor %vm1950, %vm2014
        %v2031 = vsel %vm2015, 1, 0
        %v2032 = vsel %vm2016, 1, 0
        %v2033 = vsel %vm2017, 1, 0
        %v2034 = vsel %vm2018, 1, 0
        %v2035 = vsel %vm2019, 1, 0
        %v2036 = vsel %vm2020, 1, 0
        %v2037 = vsel %vm2021, 1, 0
        %v2038 = vsel %vm2022, 1, 0
        %v2039 = vsel %vm2023, 1, 0
        %v2040 = vsel %vm2024, 1, 0
        %v2041 = vsel %vm2025, 1, 0
        %v2042 = vsel %vm2026, 1, 0
        %v2043 = vsel %vm2027, 1, 0
        %v2044 = vsel %vm2028, 1, 0
        %v2045 = vsel %vm2029, 1, 0
        %v2046 = vsel %vm2030, 1, 0
        %v2047 = vcvt.s32.f32 %v2031
        %v2048 = vcvt.s32.f32 %v2032
        %v2049 = vcvt.s32.f32 %v2033
        %v2050 = vcvt.s32.f32 %v2034
        %v2051 = vcvt.s32.f32 %v2035
        %v2052 = vcvt.s32.f32 %v2036
        %v2053 = vcvt.s32.f32 %v2037
        %v2054 = vcvt.s32.f32 %v2038
        %v2055 = vcvt.s32.f32 %v2039
        %v2056 = vcvt.s32.f32 %v2040
        %v2057 = vcvt.s32.f32 %v2041
        %v2058 = vcvt.s32.f32 %v2042
        %v2059 = vcvt.s32.f32 %v2043
        %v2060 = vcvt.s32.f32 %v2044
        %v2061 = vcvt.s32.f32 %v2045
        %v2062 = vcvt.s32.f32 %v2046
        %v2063 = vpack.c.bf16 %v2048, %v2047
        %v2064 = vpack.c.bf16 %v2050, %v2049
        %v2065 = vpack.c.bf16 %v2052, %v2051
        %v2066 = vpack.c.bf16 %v2054, %v2053
        %v2067 = vpack.c.bf16 %v2056, %v2055
        %v2068 = vpack.c.bf16 %v2058, %v2057
        %v2069 = vpack.c.bf16 %v2060, %v2059
        %v2070 = vpack.c.bf16 %v2062, %v2061
        %v2071 = vld [vmem:[%s1 + $0x40] sm:$0xf]
        %v2072 = vld [vmem:[%s1 + $0x44] sm:$0xf]
        %v2073 = vld [vmem:[%s1 + $0x48] sm:$0xf]
        %v2074 = vld [vmem:[%s1 + $0x4c] sm:$0xf]
        %v2075 = vld [vmem:[%s1 + $0x50] sm:$0xf]
        %v2076 = vld [vmem:[%s1 + $0x54] sm:$0xf]
        %v2077 = vld [vmem:[%s1 + $0x58] sm:$0xf]
        %v2078 = vld [vmem:[%s1 + $0x5c] sm:$0xf]
        %v2079 = vld [vmem:[%s1 + $0x60] sm:$0xf]
        %v2080 = vld [vmem:[%s1 + $0x64] sm:$0xf]
        %v2081 = vld [vmem:[%s1 + $0x68] sm:$0xf]
        %v2082 = vld [vmem:[%s1 + $0x6c] sm:$0xf]
        %v2083 = vld [vmem:[%s1 + $0x70] sm:$0xf]
        %v2084 = vld [vmem:[%s1 + $0x74] sm:$0xf]
        %v2085 = vld [vmem:[%s1 + $0x78] sm:$0xf]
        %v2086 = vld [vmem:[%s1 + $0x7c] sm:$0xf]
        %v2103 = vunpack.c.l.b16 %v2071
        %v2104 = vunpack.c.l.b16 %v2072
        %v2105 = vunpack.c.l.b16 %v2073
        %v2106 = vunpack.c.l.b16 %v2074
        %v2107 = vunpack.c.l.b16 %v2075
        %v2108 = vunpack.c.l.b16 %v2076
        %v2109 = vunpack.c.l.b16 %v2077
        %v2110 = vunpack.c.l.b16 %v2078
        %v2111 = vunpack.c.l.b16 %v2079
        %v2112 = vunpack.c.l.b16 %v2080
        %v2113 = vunpack.c.l.b16 %v2081
        %v2114 = vunpack.c.l.b16 %v2082
        %v2115 = vunpack.c.l.b16 %v2083
        %v2116 = vunpack.c.l.b16 %v2084
        %v2117 = vunpack.c.l.b16 %v2085
        %v2118 = vunpack.c.l.b16 %v2086
        %v2119 = vpack.c.b16 %v2104, %v2103
        %v2120 = vpack.c.b16 %v2106, %v2105
        %v2121 = vpack.c.b16 %v2108, %v2107
        %v2122 = vpack.c.b16 %v2110, %v2109
        %v2123 = vpack.c.b16 %v2112, %v2111
        %v2124 = vpack.c.b16 %v2114, %v2113
        %v2125 = vpack.c.b16 %v2116, %v2115
        %v2126 = vpack.c.b16 %v2118, %v2117
        %2135 = vmatprep.subr.bf16.mxu0 0
        %2136 = vmatpush1.bf16.msra.mxu0 %v2119
        %2137 = vmatprep.subr.bf16.mxu0 0
        %2138 = vmatpush1.bf16.msra.mxu0 %v2120
        %2139 = vmatprep.subr.bf16.mxu0 0
        %2140 = vmatpush1.bf16.msra.mxu0 %v2121
        %2141 = vmatprep.subr.bf16.mxu0 0
        %2142 = vmatpush1.bf16.msra.mxu0 %v2122
        %2143 = vmatprep.subr.bf16.mxu0 0
        %2144 = vmatpush1.bf16.msra.mxu0 %v2123
        %2145 = vmatprep.subr.bf16.mxu0 0
        %2146 = vmatpush1.bf16.msra.mxu0 %v2124
        %2147 = vmatprep.subr.bf16.mxu0 0
        %2148 = vmatpush1.bf16.msra.mxu0 %v2125
        %2149 = vmatprep.subr.bf16.mxu0 0
        %2150 = vmatpush1.bf16.msra.mxu0 %v2126
        %2151 = vmatprep.subr.bf16.mxu0 0
        %2152 = vmatpush1.bf16.msra.mxu0 0
        %2153 = vmatprep.subr.bf16.mxu0 0
        %2154 = vmatpush1.bf16.msra.mxu0 0
        %2155 = vmatprep.subr.bf16.mxu0 0
        %2156 = vmatpush1.bf16.msra.mxu0 0
        %2157 = vmatprep.subr.bf16.mxu0 0
        %2158 = vmatpush1.bf16.msra.mxu0 0
        %2159 = vmatprep.subr.bf16.mxu0 0
        %2160 = vmatpush1.bf16.msra.mxu0 0
        %2161 = vmatprep.subr.bf16.mxu0 0
        %2162 = vmatpush1.bf16.msra.mxu0 0
        %2163 = vmatprep.subr.bf16.mxu0 0
        %2164 = vmatpush1.bf16.msra.mxu0 0
        %2165 = vmatprep.subr.bf16.mxu0 0
        %2166 = vmatpush1.bf16.msra.mxu0 0
        %2167 = vmatprep.mubr.bf16.mxu0 0
        %2168 = vmatmul.mubr.bf16.gmra.mrb[0].mxu0 %v2063
        %v2169 = vpop.f32.mrb[0].mxu0
        %v2170 = vadd.f32 0.0, %v2169
        %v2171 = vpop.f32.mrb[0].mxu0
        %v2172 = vpop.f32.mrb[0].mxu0
        %v2173 = vadd.f32 0.0, %v2172
        %v2174 = vpop.f32.mrb[0].mxu0
        %2175 = vmatprep.mubr.bf16.mxu0 0
        %2176 = vmatmul.mubr.bf16.gmra.mrb[0].mxu0 %v2064
        %v2177 = vpop.f32.mrb[0].mxu0
        %v2178 = vadd.f32 0.0, %v2177
        %v2179 = vpop.f32.mrb[0].mxu0
        %v2180 = vpop.f32.mrb[0].mxu0
        %v2181 = vadd.f32 0.0, %v2180
        %v2182 = vpop.f32.mrb[0].mxu0
        %2183 = vmatprep.mubr.bf16.mxu0 0
        %2184 = vmatmul.mubr.bf16.gmra.mrb[0].mxu0 %v2065
        %v2185 = vpop.f32.mrb[0].mxu0
        %v2186 = vadd.f32 0.0, %v2185
        %v2187 = vpop.f32.mrb[0].mxu0
        %v2188 = vpop.f32.mrb[0].mxu0
        %v2189 = vadd.f32 0.0, %v2188
        %v2190 = vpop.f32.mrb[0].mxu0
        %2191 = vmatprep.mubr.bf16.mxu0 0
        %2192 = vmatmul.mubr.bf16.gmra.mrb[0].mxu0 %v2066
        %v2193 = vpop.f32.mrb[0].mxu0
        %v2194 = vadd.f32 0.0, %v2193
        %v2195 = vpop.f32.mrb[0].mxu0
        %v2196 = vpop.f32.mrb[0].mxu0
        %v2197 = vadd.f32 0.0, %v2196
        %v2198 = vpop.f32.mrb[0].mxu0
        %2199 = vmatprep.mubr.bf16.mxu0 0
        %2200 = vmatmul.mubr.bf16.gmra.mrb[0].mxu0 %v2067
        %v2201 = vpop.f32.mrb[0].mxu0
        %v2202 = vadd.f32 0.0, %v2201
        %v2203 = vpop.f32.mrb[0].mxu0
        %v2204 = vpop.f32.mrb[0].mxu0
        %v2205 = vadd.f32 0.0, %v2204
        %v2206 = vpop.f32.mrb[0].mxu0
        %2207 = vmatprep.mubr.bf16.mxu0 0
        %2208 = vmatmul.mubr.bf16.gmra.mrb[0].mxu0 %v2068
        %v2209 = vpop.f32.mrb[0].mxu0
        %v2210 = vadd.f32 0.0, %v2209
        %v2211 = vpop.f32.mrb[0].mxu0
        %v2212 = vpop.f32.mrb[0].mxu0
        %v2213 = vadd.f32 0.0, %v2212
        %v2214 = vpop.f32.mrb[0].mxu0
        %2215 = vmatprep.mubr.bf16.mxu0 0
        %2216 = vmatmul.mubr.bf16.gmra.mrb[0].mxu0 %v2069
        %v2217 = vpop.f32.mrb[0].mxu0
        %v2218 = vadd.f32 0.0, %v2217
        %v2219 = vpop.f32.mrb[0].mxu0
        %v2220 = vpop.f32.mrb[0].mxu0
        %v2221 = vadd.f32 0.0, %v2220
        %v2222 = vpop.f32.mrb[0].mxu0
        %2223 = vmatprep.mubr.bf16.mxu0 0
        %2224 = vmatmul.mubr.bf16.gmra.mrb[0].mxu0 %v2070
        %v2225 = vpop.f32.mrb[0].mxu0
        %v2226 = vadd.f32 0.0, %v2225
        %v2227 = vpop.f32.mrb[0].mxu0
        %v2228 = vpop.f32.mrb[0].mxu0
        %v2229 = vadd.f32 0.0, %v2228
        %v2230 = vpop.f32.mrb[0].mxu0
        %2231 = vdwg.mxu0
        %v2248 = vunpack.c.l.b16 %v1471
        %v2249 = vunpack.c.l.b16 %v1472
        %v2250 = vunpack.c.l.b16 %v1473
        %v2251 = vunpack.c.l.b16 %v1474
        %v2252 = vunpack.c.l.b16 %v1475
        %v2253 = vunpack.c.l.b16 %v1476
        %v2254 = vunpack.c.l.b16 %v1477
        %v2255 = vunpack.c.l.b16 %v1478
        %v2256 = vunpack.c.l.b16 %v1479
        %v2257 = vunpack.c.l.b16 %v1480
        %v2258 = vunpack.c.l.b16 %v1481
        %v2259 = vunpack.c.l.b16 %v1482
        %v2260 = vunpack.c.l.b16 %v1483
        %v2261 = vunpack.c.l.b16 %v1484
        %v2262 = vunpack.c.l.b16 %v1485
        %v2263 = vunpack.c.l.b16 %v1486
        %v2264 = vpack.c.b16 %v2249, %v2248
        %v2265 = vpack.c.b16 %v2251, %v2250
        %v2266 = vpack.c.b16 %v2253, %v2252
        %v2267 = vpack.c.b16 %v2255, %v2254
        %v2268 = vpack.c.b16 %v2257, %v2256
        %v2269 = vpack.c.b16 %v2259, %v2258
        %v2270 = vpack.c.b16 %v2261, %v2260
        %v2271 = vpack.c.b16 %v2263, %v2262
        %2280 = vmatprep.subr.bf16.mxu0 0
        %2281 = vmatpush1.bf16.msra.mxu0 %v2264
        %2282 = vmatprep.subr.bf16.mxu0 0
        %2283 = vmatpush1.bf16.msra.mxu0 %v2265
        %2284 = vmatprep.subr.bf16.mxu0 0
        %2285 = vmatpush1.bf16.msra.mxu0 %v2266
        %2286 = vmatprep.subr.bf16.mxu0 0
        %2287 = vmatpush1.bf16.msra.mxu0 %v2267
        %2288 = vmatprep.subr.bf16.mxu0 0
        %2289 = vmatpush1.bf16.msra.mxu0 %v2268
        %2290 = vmatprep.subr.bf16.mxu0 0
        %2291 = vmatpush1.bf16.msra.mxu0 %v2269
        %2292 = vmatprep.subr.bf16.mxu0 0
        %2293 = vmatpush1.bf16.msra.mxu0 %v2270
        %2294 = vmatprep.subr.bf16.mxu0 0
        %2295 = vmatpush1.bf16.msra.mxu0 %v2271
        %2296 = vmatprep.subr.bf16.mxu0 0
        %2297 = vmatpush1.bf16.msra.mxu0 0
        %2298 = vmatprep.subr.bf16.mxu0 0
        %2299 = vmatpush1.bf16.msra.mxu0 0
        %2300 = vmatprep.subr.bf16.mxu0 0
        %2301 = vmatpush1.bf16.msra.mxu0 0
        %2302 = vmatprep.subr.bf16.mxu0 0
        %2303 = vmatpush1.bf16.msra.mxu0 0
        %2304 = vmatprep.subr.bf16.mxu0 0
        %2305 = vmatpush1.bf16.msra.mxu0 0
        %2306 = vmatprep.subr.bf16.mxu0 0
        %2307 = vmatpush1.bf16.msra.mxu0 0
        %2308 = vmatprep.subr.bf16.mxu0 0
        %2309 = vmatpush1.bf16.msra.mxu0 0
        %2310 = vmatprep.subr.bf16.mxu0 0
        %2311 = vmatpush1.bf16.msra.mxu0 0
        %2312 = vmatprep.mubr.bf16.mxu0 0
        %2313 = vmatmul.mubr.bf16.gmra.mrb[0].mxu0 %v1463
        %v2314 = vpop.f32.mrb[0].mxu0
        %v2315 = vadd.f32 %v2170, %v2314
        %v2316 = vpop.f32.mrb[0].mxu0
        %v2317 = vpop.f32.mrb[0].mxu0
        %v2318 = vadd.f32 %v2173, %v2317
        %v2319 = vpop.f32.mrb[0].mxu0
        %2320 = vmatprep.mubr.bf16.mxu0 0
        %2321 = vmatmul.mubr.bf16.gmra.mrb[0].mxu0 %v1464
        %v2322 = vpop.f32.mrb[0].mxu0
        %v2323 = vadd.f32 %v2178, %v2322
        %v2324 = vpop.f32.mrb[0].mxu0
        %v2325 = vpop.f32.mrb[0].mxu0
        %v2326 = vadd.f32 %v2181, %v2325
        %v2327 = vpop.f32.mrb[0].mxu0
        %2328 = vmatprep.mubr.bf16.mxu0 0
        %2329 = vmatmul.mubr.bf16.gmra.mrb[0].mxu0 %v1465
        %v2330 = vpop.f32.mrb[0].mxu0
        %v2331 = vadd.f32 %v2186, %v2330
        %v2332 = vpop.f32.mrb[0].mxu0
        %v2333 = vpop.f32.mrb[0].mxu0
        %v2334 = vadd.f32 %v2189, %v2333
        %v2335 = vpop.f32.mrb[0].mxu0
        %2336 = vmatprep.mubr.bf16.mxu0 0
        %2337 = vmatmul.mubr.bf16.gmra.mrb[0].mxu0 %v1466
        %v2338 = vpop.f32.mrb[0].mxu0
        %v2339 = vadd.f32 %v2194, %v2338
        %v2340 = vpop.f32.mrb[0].mxu0
        %v2341 = vpop.f32.mrb[0].mxu0
        %v2342 = vadd.f32 %v2197, %v2341
        %v2343 = vpop.f32.mrb[0].mxu0
        %2344 = vmatprep.mubr.bf16.mxu0 0
        %2345 = vmatmul.mubr.bf16.gmra.mrb[0].mxu0 %v1467
        %v2346 = vpop.f32.mrb[0].mxu0
        %v2347 = vadd.f32 %v2202, %v2346
        %v2348 = vpop.f32.mrb[0].mxu0
        %v2349 = vpop.f32.mrb[0].mxu0
        %v2350 = vadd.f32 %v2205, %v2349
        %v2351 = vpop.f32.mrb[0].mxu0
        %2352 = vmatprep.mubr.bf16.mxu0 0
        %2353 = vmatmul.mubr.bf16.gmra.mrb[0].mxu0 %v1468
        %v2354 = vpop.f32.mrb[0].mxu0
        %v2355 = vadd.f32 %v2210, %v2354
        %v2356 = vpop.f32.mrb[0].mxu0
        %v2357 = vpop.f32.mrb[0].mxu0
        %v2358 = vadd.f32 %v2213, %v2357
        %v2359 = vpop.f32.mrb[0].mxu0
        %2360 = vmatprep.mubr.bf16.mxu0 0
        %2361 = vmatmul.mubr.bf16.gmra.mrb[0].mxu0 %v1469
        %v2362 = vpop.f32.mrb[0].mxu0
        %v2363 = vadd.f32 %v2218, %v2362
        %v2364 = vpop.f32.mrb[0].mxu0
        %v2365 = vpop.f32.mrb[0].mxu0
        %v2366 = vadd.f32 %v2221, %v2365
        %v2367 = vpop.f32.mrb[0].mxu0
        %2368 = vmatprep.mubr.bf16.mxu0 0
        %2369 = vmatmul.mubr.bf16.gmra.mrb[0].mxu0 %v1470
        %v2370 = vpop.f32.mrb[0].mxu0
        %v2371 = vadd.f32 %v2226, %v2370
        %v2372 = vpop.f32.mrb[0].mxu0
        %v2373 = vpop.f32.mrb[0].mxu0
        %v2374 = vadd.f32 %v2229, %v2373
        %v2375 = vpop.f32.mrb[0].mxu0
        %2376 = vdwg.mxu0
        %s2377 = scalar_lea.vmem %s137, 128 [#allocation2]
        %2378 = vst [vmem:[%s2377] sm:$0xff] %v2315
        %2379 = vst [vmem:[%s2377 + $0x8] sm:$0xff] %v2318
        %2380 = vst [vmem:[%s2377 + $0x10] sm:$0xff] %v2323
        %2381 = vst [vmem:[%s2377 + $0x18] sm:$0xff] %v2326
        %2382 = vst [vmem:[%s2377 + $0x20] sm:$0xff] %v2331
        %2383 = vst [vmem:[%s2377 + $0x28] sm:$0xff] %v2334
        %2384 = vst [vmem:[%s2377 + $0x30] sm:$0xff] %v2339
        %2385 = vst [vmem:[%s2377 + $0x38] sm:$0xff] %v2342
        %2386 = vst [vmem:[%s2377 + $0x40] sm:$0xff] %v2347
        %2387 = vst [vmem:[%s2377 + $0x48] sm:$0xff] %v2350
        %2388 = vst [vmem:[%s2377 + $0x50] sm:$0xff] %v2355
        %2389 = vst [vmem:[%s2377 + $0x58] sm:$0xff] %v2358
        %2390 = vst [vmem:[%s2377 + $0x60] sm:$0xff] %v2363
        %2391 = vst [vmem:[%s2377 + $0x68] sm:$0xff] %v2366
        %2392 = vst [vmem:[%s2377 + $0x70] sm:$0xff] %v2371
        %2393 = vst [vmem:[%s2377 + $0x78] sm:$0xff] %v2374
        %s2394 = sand.u32 %s71, 1
        %s2395 = scalar_lea.sflag [#allocation3], %s2394
        %s2396 = sand.u32 %s71, 1
        %s2397 = smul.addr %s2396, 256
        %s2398 = scalar_lea.vmem [#allocation2], %s2397
        // Predicated region
        $region29: #{tpu_custom_call.1} parent=27 // pred_check
          %p2399 = pneg %p81
        $region30: #{tpu_custom_call.1} parent=27 // pred_check_branch
          %2401 = sbr.rel (%p2399) target = $region32
        $region31: #{tpu_custom_call.1} parent=27 // pred_region
          %s2402 = smul.u32 32, %s16
          %s2404 = ssub.s32 4096, 4096
          %2405 = vsyncadd %s2395, %s2404
          %s2406 = smul.addr %s2402, 128
          %s2407 = scalar_lea.hbm %s2, %s2406
          %s2408 = sshll.u32 %s2398, 4
          %s2409 = int_to_ptr.vmem [resolvable:$true] %s2408
          %2414 = dma.vmem_to_hbm [thread:$0]  %s2409, 4096, %s2407, %s2395, 128, 128, 8
        $region32: #{tpu_custom_call.1} parent=27 // pred_fallthru
          _
      $region28: #{tpu_custom_call.1} parent=5 // pred_fallthru
        _
      %p2415 = scmp.le.s32.totalorder 2, %s11
      // Predicated region
      $region33: #{tpu_custom_call.1} parent=5 // pred_check
        %p2416 = pneg %p2415
      $region34: #{tpu_custom_call.1} parent=5 // pred_check_branch
        %2418 = sbr.rel (%p2416) target = $region36
      $region35: #{tpu_custom_call.1} parent=5 // pred_region
        %s2419 = ssub.s32 %s11, 2
        // Predicated region
        $region37: #{tpu_custom_call.1} parent=35 // pred_check
          %p2420 = pneg %p87
        $region38: #{tpu_custom_call.1} parent=35 // pred_check_branch
          %2422 = sbr.rel (%p2420) target = $region40
        $region39: #{tpu_custom_call.1} parent=35 // pred_region
          %s2423 = sand.u32 %s72, 1
          %s2424 = scalar_lea.sflag [#allocation3], %s2423
          %s2425 = sand.u32 %s72, 1
          %s2426 = smul.addr %s2425, 256
          %s2427 = scalar_lea.vmem [#allocation2], %s2426
          %2428 = dma.done %s2424, 4096
        $region40: #{tpu_custom_call.1} parent=35 // pred_fallthru
          _
      $region36: #{tpu_custom_call.1} parent=5 // pred_fallthru
        _
    $region6: #{tpu_custom_call.1} parent=1 // loop_footer
      %s15 = sadd.s32 1, %s11
    $region7: #{tpu_custom_call.1} parent=1 // loop_footer_branch
      %10 = sbr.rel target = $region3
    $region8: #{tpu_custom_call.1} parent=1 // loop_exit
      _
    %2429 = vsyncpa [#allocation3], 1
    %s2430 = scalar_lea.sflag [#allocation3], 1
    %2431 = vsyncpa %s2430, 1

</llo_original>
